<compile_context>
chip_gen: v5e
topology: v5e:2x2
jax: 0.10.0
libtpu: 0.0.40
codegen_flags: <defaults>
</compile_context>

<pallas_src>
import math

import numpy as np
import jax
import jax.numpy as jnp
from jax.experimental import pallas as pl
from jax.experimental.pallas import tpu as pltpu

F32 = jnp.float32
_VMEM = pl.BlockSpec(memory_space=pltpu.MemorySpace.VMEM)


def _dot(a, b):
    return jnp.dot(a, b, preferred_element_type=jnp.float32)


# ----------------------------------------------------------------------------
# Host-side (numpy) constant matrices
# ----------------------------------------------------------------------------
def _shift_mats(batch, length):
    """Block-diagonal shift-by-one matrices over (batch*length) rows.

    (SD @ X)[b*L + l] = X[b*L + l - 1]  (zero at l == 0)      -> conv tap j=0
    (SU @ X)[b*L + l] = X[b*L + l + 1]  (zero at l == L - 1)  -> conv tap j=2
    """
    n = batch * length
    r = np.arange(n)
    li = r % length
    sd = ((r[:, None] - 1 == r[None, :]) & (li[:, None] > 0)).astype(np.float32)
    su = ((r[:, None] + 1 == r[None, :]) & (li[:, None] < length - 1)).astype(np.float32)
    return jnp.asarray(sd), jnp.asarray(su)


def _batched_flatten_mats(batch, rows_per_batch, out_dim):
    """Selection matrices so that a per-batch flatten->Linear becomes
    R @ ((Y2d @ Wcat) * M) @ F  with Y2d of shape (batch*rows_per_batch, feat)."""
    m = np.tile(np.kron(np.eye(rows_per_batch), np.ones((1, out_dim))),
                (batch, 1)).astype(np.float32)
    r = np.kron(np.eye(batch), np.ones((1, rows_per_batch))).astype(np.float32)
    f = np.tile(np.eye(out_dim), (rows_per_batch, 1)).astype(np.float32)
    return jnp.asarray(m), jnp.asarray(r), jnp.asarray(f)


def _conv3_taps(w):
    """torch Conv1d weight (Cout, Cin, 3) -> (3, Cin, Cout) tap matrices."""
    return jnp.transpose(w, (2, 1, 0))


# ----------------------------------------------------------------------------
# Kernel A: x3 branch (conv1 -> conv2 -> conv3 -> penult1)
# ----------------------------------------------------------------------------
def _seq_branch_kernel(x_ref, sd_ref, su_ref,
                       c1w_ref, c1b_ref, c2w_ref, c2b_ref, c3w_ref, c3b_ref,
                       pw_ref, pm_ref, pr_ref, pf_ref, pb_ref,
                       o_ref):
    sd = sd_ref[...]
    su = su_ref[...]

    def conv_k3_relu(v, w_ref, b_ref):
        y = (_dot(_dot(sd, v), w_ref[0]) + _dot(v, w_ref[1])
             + _dot(_dot(su, v), w_ref[2]) + b_ref[...])
        return jnp.maximum(y, 0.0)

    h = conv_k3_relu(x_ref[...], c1w_ref, c1b_ref)      # (B*5, 16)
    h = conv_k3_relu(h, c2w_ref, c2b_ref)               # (B*5, 32)
    h = conv_k3_relu(h, c3w_ref, c3b_ref)               # (B*5, 64)
    # penult1 on the torch flatten order (c*5 + l), done with selection matmuls
    z = _dot(h, pw_ref[...]) * pm_ref[...]              # (B*5, 5*32)
    o_ref[...] = _dot(_dot(pr_ref[...], z), pf_ref[...]) + pb_ref[...]   # (B, 32)


# ----------------------------------------------------------------------------
# Kernel B: inception convs + LSTM + lay1/lay2/lay3 + softmax
# ----------------------------------------------------------------------------
def _make_main_kernel(T, N, H):
    def kernel(seq_ref, x_ref, sd_ref, su_ref,
               w11_ref, b11_ref, w12_ref, b12_ref,
               w21a_ref, w21b_ref, b21_ref,
               w22a_ref, w22b_ref, b22_ref,
               wiha_ref, wihb_ref, bg_ref, whh_ref,
               w1c_ref, m1_ref, r1_ref, f1_ref, b1_ref,
               w2a_ref, w2b_ref, b2_ref, w3_ref, b3_ref,
               o_ref, y_scr):
        sd = sd_ref[...]
        su = su_ref[...]
        x = x_ref[...]                                   # (T*N, C) channels-last
        xd = _dot(sd, x)
        xu = _dot(su, x)

        # --- inception stage 1 (A1_1 k=1, A1_2 k=3) ---
        y11 = _dot(x, w11_ref[...]) + b11_ref[...]                        # (T*N, 120)
        y12 = (_dot(xd, w12_ref[0]) + _dot(x, w12_ref[1])
               + _dot(xu, w12_ref[2]) + b12_ref[...])                     # (T*N, 120)

        # --- inception stage 2: cat(y11, y12) handled via row-split weights ---
        y11d = _dot(sd, y11); y11u = _dot(su, y11)
        y12d = _dot(sd, y12); y12u = _dot(su, y12)
        y21 = (_dot(y11, w21a_ref[...]) + _dot(y12, w21b_ref[...])
               + b21_ref[...])                                            # (T*N, 64)
        y22 = (_dot(y11d, w22a_ref[0]) + _dot(y12d, w22b_ref[0])
               + _dot(y11, w22a_ref[1]) + _dot(y12, w22b_ref[1])
               + _dot(y11u, w22a_ref[2]) + _dot(y12u, w22b_ref[2])
               + b22_ref[...])                                            # (T*N, 64)

        # --- LSTM: hoisted input projection for every (t, n) row at once ---
        gx = (_dot(y21, wiha_ref[...]) + _dot(y22, wihb_ref[...])
              + bg_ref[...])                                              # (T*N, 4H)

        whh = whh_ref[...]                                                # (H, 4H)
        h = jnp.zeros((N, H), jnp.float32)
        c = jnp.zeros((N, H), jnp.float32)
        for t in range(T):                         # T = batch (time axis), unrolled
            g = gx[t * N:(t + 1) * N, :] + _dot(h, whh)                   # (N, 4H)
            i_g = jax.nn.sigmoid(g[:, 0 * H:1 * H])
            f_g = jax.nn.sigmoid(g[:, 1 * H:2 * H])
            g_g = jnp.tanh(g[:, 2 * H:3 * H])
            o_g = jax.nn.sigmoid(g[:, 3 * H:4 * H])
            c = f_g * c + i_g * g_g
            h = o_g * jnp.tanh(c)
            y_scr[t * N:(t + 1) * N, :] = h

        # --- lay1 on the torch (n*H + hh) flatten, via selection matmuls ---
        z = _dot(y_scr[...], w1c_ref[...]) * m1_ref[...]                  # (T*N, N*32)
        y1 = _dot(_dot(r1_ref[...], z), f1_ref[...]) + b1_ref[...]        # (T, 32)

        # --- cat(seq_out, y1) folded into split lay2 weights; lay3; softmax ---
        z2 = (_dot(seq_ref[...], w2a_ref[...]) + _dot(y1, w2b_ref[...])
              + b2_ref[...])                                              # (T, 32)
        z3 = _dot(z2, w3_ref[...]) + b3_ref[...]                          # (T, 2)
        z3 = z3 - jnp.max(z3, axis=1, keepdims=True)
        e = jnp.exp(z3)
        o_ref[...] = e / jnp.sum(e, axis=1, keepdims=True)
    return kernel


# ----------------------------------------------------------------------------
# Parameters (torch-layout weights)
# ----------------------------------------------------------------------------
def init_params(key, seq_len, channel):
    keys = iter(jax.random.split(key, 64))

    def u(shape, fan_in):
        bound = 1.0 / math.sqrt(fan_in)
        return jax.random.uniform(next(keys), shape, jnp.float32, -bound, bound)

    p = {}
    p['para2'] = jax.random.uniform(next(keys), (5,), jnp.float32, 0.0, 1.0)
    # conv stack on x3
    p['conv1_w'] = u((16, 20, 3), 20 * 3);  p['conv1_b'] = u((16,), 20 * 3)
    p['conv2_w'] = u((32, 16, 3), 16 * 3);  p['conv2_b'] = u((32,), 16 * 3)
    p['conv3_w'] = u((64, 32, 3), 32 * 3);  p['conv3_b'] = u((64,), 32 * 3)
    p['penult1_w'] = u((32, 320), 320);     p['penult1_b'] = u((32,), 320)
    # inception branches on x
    p['A1_1_w'] = u((120, channel, 1), channel);      p['A1_1_b'] = u((120,), channel)
    p['A1_2_w'] = u((120, channel, 3), channel * 3);  p['A1_2_b'] = u((120,), channel * 3)
    p['A2_1_w'] = u((64, 240, 1), 240);               p['A2_1_b'] = u((64,), 240)
    p['A2_2_w'] = u((64, 240, 3), 240 * 3);           p['A2_2_b'] = u((64,), 240 * 3)
    # LSTM(input=128, hidden=64)
    H = 64
    p['lstm_wih'] = u((4 * H, 128), H);  p['lstm_whh'] = u((4 * H, H), H)
    p['lstm_bih'] = u((4 * H,), H);      p['lstm_bhh'] = u((4 * H,), H)
    # heads
    p['lay1_w'] = u((32, 64 * seq_len), 64 * seq_len)
    p['lay1_b'] = u((32,), 64 * seq_len)
    p['lay2_w'] = u((32, 64), 64);  p['lay2_b'] = u((32,), 64)
    p['lay3_w'] = u((2, 32), 32);   p['lay3_b'] = u((2,), 32)
    # NOTE: self.pool / self.pooling1 are declared in __init__ but never used
    # in forward, so they are intentionally not instantiated here.
    return p


# ----------------------------------------------------------------------------
# Forward
# ----------------------------------------------------------------------------
def lstm6_forward(p, x, x3):
    # x : (B, channel, seq_len)   x3 : (B, 20, 5)
    B, channel, L = x.shape
    _, C3, L3 = x3.shape
    H = 64

    # tiny XLA glue: para2 scaling + NCW -> channels-last (rows, C) layout
    x3f = ((x3.astype(F32) * (1.0 + p['para2']))
           .transpose(0, 2, 1).reshape(B * L3, C3))
    xf = x.astype(F32).transpose(0, 2, 1).reshape(B * L, channel)

    # ---------------- kernel A: x3 conv stack + penult1 ----------------
    sd3, su3 = _shift_mats(B, L3)
    c1w = _conv3_taps(p['conv1_w']); c1b = p['conv1_b'].reshape(1, -1)
    c2w = _conv3_taps(p['conv2_w']); c2b = p['conv2_b'].reshape(1, -1)
    c3w = _conv3_taps(p['conv3_w']); c3b = p['conv3_b'].reshape(1, -1)
    pout = p['penult1_w'].shape[0]                                    # 32
    # penult1 weight indexed by torch-flatten order (c*L3 + l)
    pw = (p['penult1_w'].reshape(pout, 64, L3)
          .transpose(1, 2, 0).reshape(64, L3 * pout))                 # (64, L3*32)
    pm, pr, pf = _batched_flatten_mats(B, L3, pout)
    pb = p['penult1_b'].reshape(1, -1)

    args_a = (x3f, sd3, su3, c1w, c1b, c2w, c2b, c3w, c3b, pw, pm, pr, pf, pb)
    seq_out = pl.pallas_call(
        _seq_branch_kernel,
        out_shape=jax.ShapeDtypeStruct((B, pout), F32),
        in_specs=[_VMEM] * len(args_a),
        out_specs=_VMEM,
    )(*args_a)

    # ---------------- kernel B: inception + LSTM + tail ----------------
    sdx, sux = _shift_mats(B, L)

    w11 = p['A1_1_w'].reshape(120, channel).T
    b11 = p['A1_1_b'].reshape(1, -1)
    w12 = _conv3_taps(p['A1_2_w'])                                    # (3, C, 120)
    b12 = p['A1_2_b'].reshape(1, -1)

    w21 = p['A2_1_w'].reshape(64, 240)
    w21a = w21[:, :120].T; w21b = w21[:, 120:].T                      # (120, 64)
    b21 = p['A2_1_b'].reshape(1, -1)
    w22 = _conv3_taps(p['A2_2_w'])                                    # (3, 240, 64)
    w22a = w22[:, :120, :]; w22b = w22[:, 120:, :]
    b22 = p['A2_2_b'].reshape(1, -1)

    # LSTM weights: input = cat(A2_1 out, A2_2 out) -> split W_ih by input chan
    wih = p['lstm_wih']                                               # (4H, 128)
    wiha = wih[:, :H].T                                               # (64, 4H)
    wihb = wih[:, H:].T
    bg = (p['lstm_bih'] + p['lstm_bhh']).reshape(1, -1)
    whh = p['lstm_whh'].T                                             # (H, 4H)

    # lay1 over the torch (n*H + hh) flatten of the (T, N, H) LSTM output
    T, N = B, L
    oc1 = p['lay1_w'].shape[0]                                        # 32
    w1c = (p['lay1_w'].reshape(oc1, N, H)
           .transpose(2, 1, 0).reshape(H, N * oc1))                   # (64, N*32)
    m1, r1, f1 = _batched_flatten_mats(T, N, oc1)
    b1 = p['lay1_b'].reshape(1, -1)

    # lay2 split: first 32 inputs = seq_out, last 32 = lay1 output
    w2 = p['lay2_w']
    w2a = w2[:, :32].T; w2b = w2[:, 32:].T
    b2 = p['lay2_b'].reshape(1, -1)
    w3 = p['lay3_w'].T
    b3 = p['lay3_b'].reshape(1, -1)

    args_b = (seq_out, xf, sdx, sux,
              w11, b11, w12, b12,
              w21a, w21b, b21, w22a, w22b, b22,
              wiha, wihb, bg, whh,
              w1c, m1, r1, f1, b1,
              w2a, w2b, b2, w3, b3)
    out = pl.pallas_call(
        _make_main_kernel(T, N, H),
        out_shape=jax.ShapeDtypeStruct((T, 2), F32),
        in_specs=[_VMEM] * len(args_b),
        out_specs=_VMEM,
        scratch_shapes=[pltpu.VMEM((T * N, H), F32)],
    )(*args_b)
    return out


if __name__ == "__main__":
    B, channel, seq_len = 2, 4, 8
    key = jax.random.PRNGKey(0)
    kp, kx, kx3 = jax.random.split(key, 3)
    params = init_params(kp, seq_len, channel)
    x = jax.random.normal(kx, (B, channel, seq_len), jnp.float32)
    # penult1 is Linear(320, 32) and the conv stack ends with 64 channels,
    # so x3's spatial length must be 5 (64 * 5 = 320); conv1 expects 20 channels.
    x3 = jax.random.normal(kx3, (B, 20, 5), jnp.float32)

    fwd = jax.jit(lstm6_forward)
    out = jax.block_until_ready(fwd(params, x, x3))
    assert out.shape == (B, 2)
    assert bool(jnp.all(jnp.isfinite(out)))
    assert bool(jnp.allclose(jnp.sum(out, axis=1), 1.0, atol=1e-5))
    print("KERNEL_OK")
</pallas_src>

<mosaic_0001>
module attributes {stable_mosaic.version = 11 : i64} {
  func.func @_seq_branch_kernel(%arg0: memref<10x20xf32, #tpu.memory_space<vmem>>, %arg1: memref<10x10xf32, #tpu.memory_space<vmem>>, %arg2: memref<10x10xf32, #tpu.memory_space<vmem>>, %arg3: memref<3x20x16xf32, #tpu.memory_space<vmem>>, %arg4: memref<1x16xf32, #tpu.memory_space<vmem>>, %arg5: memref<3x16x32xf32, #tpu.memory_space<vmem>>, %arg6: memref<1x32xf32, #tpu.memory_space<vmem>>, %arg7: memref<3x32x64xf32, #tpu.memory_space<vmem>>, %arg8: memref<1x64xf32, #tpu.memory_space<vmem>>, %arg9: memref<64x160xf32, #tpu.memory_space<vmem>>, %arg10: memref<10x160xf32, #tpu.memory_space<vmem>>, %arg11: memref<2x10xf32, #tpu.memory_space<vmem>>, %arg12: memref<160x32xf32, #tpu.memory_space<vmem>>, %arg13: memref<1x32xf32, #tpu.memory_space<vmem>>, %arg14: memref<2x32xf32, #tpu.memory_space<vmem>>) attributes {dimension_semantics = [], scalar_prefetch = 0 : i64, scratch_operands = 0 : i64, tpu.core_type = #tpu.core_type<tc>} {
    %c0 = arith.constant 0 : index
    %c0_0 = arith.constant 0 : index
    %0 = vector.load %arg1[%c0, %c0_0] : memref<10x10xf32, #tpu.memory_space<vmem>>, vector<10x10xf32>
    %c0_1 = arith.constant 0 : index
    %c0_2 = arith.constant 0 : index
    %1 = vector.load %arg2[%c0_1, %c0_2] : memref<10x10xf32, #tpu.memory_space<vmem>>, vector<10x10xf32>
    %c0_3 = arith.constant 0 : index
    %c0_4 = arith.constant 0 : index
    %2 = vector.load %arg0[%c0_3, %c0_4] : memref<10x20xf32, #tpu.memory_space<vmem>>, vector<10x20xf32>
    %cst = arith.constant dense<0.000000e+00> : vector<10x20xf32>
    %3 = tpu.matmul %0, %2, %cst {dimension_numbers = #tpu.dot_dimension_numbers<[1], [0], [0], [1], [0, 0, 1, 1], [], []>} : vector<10x10xf32>, vector<10x20xf32>, vector<10x20xf32> -> vector<10x20xf32>
    %c0_5 = arith.constant 0 : index
    %c0_6 = arith.constant 0 : index
    %c0_7 = arith.constant 0 : index
    %4 = vector.load %arg3[%c0_5, %c0_6, %c0_7] : memref<3x20x16xf32, #tpu.memory_space<vmem>>, vector<1x20x16xf32>
    %5 = vector.shape_cast %4 : vector<1x20x16xf32> to vector<20x16xf32>
    %cst_8 = arith.constant dense<0.000000e+00> : vector<10x16xf32>
    %6 = tpu.matmul %3, %5, %cst_8 {dimension_numbers = #tpu.dot_dimension_numbers<[1], [0], [0], [1], [0, 0, 1, 1], [], []>} : vector<10x20xf32>, vector<20x16xf32>, vector<10x16xf32> -> vector<10x16xf32>
    %c1 = arith.constant 1 : index
    %c0_9 = arith.constant 0 : index
    %c0_10 = arith.constant 0 : index
    %7 = vector.load %arg3[%c1, %c0_9, %c0_10] : memref<3x20x16xf32, #tpu.memory_space<vmem>>, vector<1x20x16xf32>
    %8 = vector.shape_cast %7 : vector<1x20x16xf32> to vector<20x16xf32>
    %cst_11 = arith.constant dense<0.000000e+00> : vector<10x16xf32>
    %9 = tpu.matmul %2, %8, %cst_11 {dimension_numbers = #tpu.dot_dimension_numbers<[1], [0], [0], [1], [0, 0, 1, 1], [], []>} : vector<10x20xf32>, vector<20x16xf32>, vector<10x16xf32> -> vector<10x16xf32>
    %10 = arith.addf %6, %9 : vector<10x16xf32>
    %cst_12 = arith.constant dense<0.000000e+00> : vector<10x20xf32>
    %11 = tpu.matmul %1, %2, %cst_12 {dimension_numbers = #tpu.dot_dimension_numbers<[1], [0], [0], [1], [0, 0, 1, 1], [], []>} : vector<10x10xf32>, vector<10x20xf32>, vector<10x20xf32> -> vector<10x20xf32>
    %c2 = arith.constant 2 : index
    %c0_13 = arith.constant 0 : index
    %c0_14 = arith.constant 0 : index
    %12 = vector.load %arg3[%c2, %c0_13, %c0_14] : memref<3x20x16xf32, #tpu.memory_space<vmem>>, vector<1x20x16xf32>
    %13 = vector.shape_cast %12 : vector<1x20x16xf32> to vector<20x16xf32>
    %cst_15 = arith.constant dense<0.000000e+00> : vector<10x16xf32>
    %14 = tpu.matmul %11, %13, %cst_15 {dimension_numbers = #tpu.dot_dimension_numbers<[1], [0], [0], [1], [0, 0, 1, 1], [], []>} : vector<10x20xf32>, vector<20x16xf32>, vector<10x16xf32> -> vector<10x16xf32>
    %15 = arith.addf %10, %14 : vector<10x16xf32>
    %c0_16 = arith.constant 0 : index
    %c0_17 = arith.constant 0 : index
    %16 = vector.load %arg4[%c0_16, %c0_17] : memref<1x16xf32, #tpu.memory_space<vmem>>, vector<1x16xf32>
    %17 = vector.broadcast %16 : vector<1x16xf32> to vector<10x16xf32>
    %18 = arith.addf %15, %17 : vector<10x16xf32>
    %cst_18 = arith.constant 0.000000e+00 : f32
    %19 = vector.broadcast %cst_18 : f32 to vector<10x16xf32>
    %20 = arith.maximumf %18, %19 : vector<10x16xf32>
    %cst_19 = arith.constant dense<0.000000e+00> : vector<10x16xf32>
    %21 = tpu.matmul %0, %20, %cst_19 {dimension_numbers = #tpu.dot_dimension_numbers<[1], [0], [0], [1], [0, 0, 1, 1], [], []>} : vector<10x10xf32>, vector<10x16xf32>, vector<10x16xf32> -> vector<10x16xf32>
    %c0_20 = arith.constant 0 : index
    %c0_21 = arith.constant 0 : index
    %c0_22 = arith.constant 0 : index
    %22 = vector.load %arg5[%c0_20, %c0_21, %c0_22] : memref<3x16x32xf32, #tpu.memory_space<vmem>>, vector<1x16x32xf32>
    %23 = vector.shape_cast %22 : vector<1x16x32xf32> to vector<16x32xf32>
    %cst_23 = arith.constant dense<0.000000e+00> : vector<10x32xf32>
    %24 = tpu.matmul %21, %23, %cst_23 {dimension_numbers = #tpu.dot_dimension_numbers<[1], [0], [0], [1], [0, 0, 1, 1], [], []>} : vector<10x16xf32>, vector<16x32xf32>, vector<10x32xf32> -> vector<10x32xf32>
    %c1_24 = arith.constant 1 : index
    %c0_25 = arith.constant 0 : index
    %c0_26 = arith.constant 0 : index
    %25 = vector.load %arg5[%c1_24, %c0_25, %c0_26] : memref<3x16x32xf32, #tpu.memory_space<vmem>>, vector<1x16x32xf32>
    %26 = vector.shape_cast %25 : vector<1x16x32xf32> to vector<16x32xf32>
    %cst_27 = arith.constant dense<0.000000e+00> : vector<10x32xf32>
    %27 = tpu.matmul %20, %26, %cst_27 {dimension_numbers = #tpu.dot_dimension_numbers<[1], [0], [0], [1], [0, 0, 1, 1], [], []>} : vector<10x16xf32>, vector<16x32xf32>, vector<10x32xf32> -> vector<10x32xf32>
    %28 = arith.addf %24, %27 : vector<10x32xf32>
    %cst_28 = arith.constant dense<0.000000e+00> : vector<10x16xf32>
    %29 = tpu.matmul %1, %20, %cst_28 {dimension_numbers = #tpu.dot_dimension_numbers<[1], [0], [0], [1], [0, 0, 1, 1], [], []>} : vector<10x10xf32>, vector<10x16xf32>, vector<10x16xf32> -> vector<10x16xf32>
    %c2_29 = arith.constant 2 : index
    %c0_30 = arith.constant 0 : index
    %c0_31 = arith.constant 0 : index
    %30 = vector.load %arg5[%c2_29, %c0_30, %c0_31] : memref<3x16x32xf32, #tpu.memory_space<vmem>>, vector<1x16x32xf32>
    %31 = vector.shape_cast %30 : vector<1x16x32xf32> to vector<16x32xf32>
    %cst_32 = arith.constant dense<0.000000e+00> : vector<10x32xf32>
    %32 = tpu.matmul %29, %31, %cst_32 {dimension_numbers = #tpu.dot_dimension_numbers<[1], [0], [0], [1], [0, 0, 1, 1], [], []>} : vector<10x16xf32>, vector<16x32xf32>, vector<10x32xf32> -> vector<10x32xf32>
    %33 = arith.addf %28, %32 : vector<10x32xf32>
    %c0_33 = arith.constant 0 : index
    %c0_34 = arith.constant 0 : index
    %34 = vector.load %arg6[%c0_33, %c0_34] : memref<1x32xf32, #tpu.memory_space<vmem>>, vector<1x32xf32>
    %35 = vector.broadcast %34 : vector<1x32xf32> to vector<10x32xf32>
    %36 = arith.addf %33, %35 : vector<10x32xf32>
    %cst_35 = arith.constant 0.000000e+00 : f32
    %37 = vector.broadcast %cst_35 : f32 to vector<10x32xf32>
    %38 = arith.maximumf %36, %37 : vector<10x32xf32>
    %cst_36 = arith.constant dense<0.000000e+00> : vector<10x32xf32>
    %39 = tpu.matmul %0, %38, %cst_36 {dimension_numbers = #tpu.dot_dimension_numbers<[1], [0], [0], [1], [0, 0, 1, 1], [], []>} : vector<10x10xf32>, vector<10x32xf32>, vector<10x32xf32> -> vector<10x32xf32>
    %c0_37 = arith.constant 0 : index
    %c0_38 = arith.constant 0 : index
    %c0_39 = arith.constant 0 : index
    %40 = vector.load %arg7[%c0_37, %c0_38, %c0_39] : memref<3x32x64xf32, #tpu.memory_space<vmem>>, vector<1x32x64xf32>
    %41 = vector.shape_cast %40 : vector<1x32x64xf32> to vector<32x64xf32>
    %cst_40 = arith.constant dense<0.000000e+00> : vector<10x64xf32>
    %42 = tpu.matmul %39, %41, %cst_40 {dimension_numbers = #tpu.dot_dimension_numbers<[1], [0], [0], [1], [0, 0, 1, 1], [], []>} : vector<10x32xf32>, vector<32x64xf32>, vector<10x64xf32> -> vector<10x64xf32>
    %c1_41 = arith.constant 1 : index
    %c0_42 = arith.constant 0 : index
    %c0_43 = arith.constant 0 : index
    %43 = vector.load %arg7[%c1_41, %c0_42, %c0_43] : memref<3x32x64xf32, #tpu.memory_space<vmem>>, vector<1x32x64xf32>
    %44 = vector.shape_cast %43 : vector<1x32x64xf32> to vector<32x64xf32>
    %cst_44 = arith.constant dense<0.000000e+00> : vector<10x64xf32>
    %45 = tpu.matmul %38, %44, %cst_44 {dimension_numbers = #tpu.dot_dimension_numbers<[1], [0], [0], [1], [0, 0, 1, 1], [], []>} : vector<10x32xf32>, vector<32x64xf32>, vector<10x64xf32> -> vector<10x64xf32>
    %46 = arith.addf %42, %45 : vector<10x64xf32>
    %cst_45 = arith.constant dense<0.000000e+00> : vector<10x32xf32>
    %47 = tpu.matmul %1, %38, %cst_45 {dimension_numbers = #tpu.dot_dimension_numbers<[1], [0], [0], [1], [0, 0, 1, 1], [], []>} : vector<10x10xf32>, vector<10x32xf32>, vector<10x32xf32> -> vector<10x32xf32>
    %c2_46 = arith.constant 2 : index
    %c0_47 = arith.constant 0 : index
    %c0_48 = arith.constant 0 : index
    %48 = vector.load %arg7[%c2_46, %c0_47, %c0_48] : memref<3x32x64xf32, #tpu.memory_space<vmem>>, vector<1x32x64xf32>
    %49 = vector.shape_cast %48 : vector<1x32x64xf32> to vector<32x64xf32>
    %cst_49 = arith.constant dense<0.000000e+00> : vector<10x64xf32>
    %50 = tpu.matmul %47, %49, %cst_49 {dimension_numbers = #tpu.dot_dimension_numbers<[1], [0], [0], [1], [0, 0, 1, 1], [], []>} : vector<10x32xf32>, vector<32x64xf32>, vector<10x64xf32> -> vector<10x64xf32>
    %51 = arith.addf %46, %50 : vector<10x64xf32>
    %c0_50 = arith.constant 0 : index
    %c0_51 = arith.constant 0 : index
    %52 = vector.load %arg8[%c0_50, %c0_51] : memref<1x64xf32, #tpu.memory_space<vmem>>, vector<1x64xf32>
    %53 = vector.broadcast %52 : vector<1x64xf32> to vector<10x64xf32>
    %54 = arith.addf %51, %53 : vector<10x64xf32>
    %cst_52 = arith.constant 0.000000e+00 : f32
    %55 = vector.broadcast %cst_52 : f32 to vector<10x64xf32>
    %56 = arith.maximumf %54, %55 : vector<10x64xf32>
    %c0_53 = arith.constant 0 : index
    %c0_54 = arith.constant 0 : index
    %57 = vector.load %arg9[%c0_53, %c0_54] : memref<64x160xf32, #tpu.memory_space<vmem>>, vector<64x160xf32>
    %cst_55 = arith.constant dense<0.000000e+00> : vector<10x160xf32>
    %58 = tpu.matmul %56, %57, %cst_55 {dimension_numbers = #tpu.dot_dimension_numbers<[1], [0], [0], [1], [0, 0, 1, 1], [], []>} : vector<10x64xf32>, vector<64x160xf32>, vector<10x160xf32> -> vector<10x160xf32>
    %c0_56 = arith.constant 0 : index
    %c0_57 = arith.constant 0 : index
    %59 = vector.load %arg10[%c0_56, %c0_57] : memref<10x160xf32, #tpu.memory_space<vmem>>, vector<10x160xf32>
    %60 = arith.mulf %58, %59 : vector<10x160xf32>
    %c0_58 = arith.constant 0 : index
    %c0_59 = arith.constant 0 : index
    %61 = vector.load %arg11[%c0_58, %c0_59] : memref<2x10xf32, #tpu.memory_space<vmem>>, vector<2x10xf32>
    %cst_60 = arith.constant dense<0.000000e+00> : vector<2x160xf32>
    %62 = tpu.matmul %61, %60, %cst_60 {dimension_numbers = #tpu.dot_dimension_numbers<[1], [0], [0], [1], [0, 0, 1, 1], [], []>} : vector<2x10xf32>, vector<10x160xf32>, vector<2x160xf32> -> vector<2x160xf32>
    %c0_61 = arith.constant 0 : index
    %c0_62 = arith.constant 0 : index
    %63 = vector.load %arg12[%c0_61, %c0_62] : memref<160x32xf32, #tpu.memory_space<vmem>>, vector<160x32xf32>
    %cst_63 = arith.constant dense<0.000000e+00> : vector<2x32xf32>
    %64 = tpu.matmul %62, %63, %cst_63 {dimension_numbers = #tpu.dot_dimension_numbers<[1], [0], [0], [1], [0, 0, 1, 1], [], []>} : vector<2x160xf32>, vector<160x32xf32>, vector<2x32xf32> -> vector<2x32xf32>
    %c0_64 = arith.constant 0 : index
    %c0_65 = arith.constant 0 : index
    %65 = vector.load %arg13[%c0_64, %c0_65] : memref<1x32xf32, #tpu.memory_space<vmem>>, vector<1x32xf32>
    %66 = vector.broadcast %65 : vector<1x32xf32> to vector<2x32xf32>
    %67 = arith.addf %64, %66 : vector<2x32xf32>
    %c0_66 = arith.constant 0 : index
    %c0_67 = arith.constant 0 : index
    %68 = vector.load %arg14[%c0_66, %c0_67] : memref<2x32xf32, #tpu.memory_space<vmem>>, vector<2x32xf32>
    tpu.vector_store %arg14[%c0_66, %c0_67], %67 {strides = array<i32>} : memref<2x32xf32, #tpu.memory_space<vmem>>, vector<2x32xf32>,
    return
  }
}

module attributes {stable_mosaic.version = 11 : i64} {
  func.func @kernel(%arg0: memref<2x32xf32, #tpu.memory_space<vmem>>, %arg1: memref<16x4xf32, #tpu.memory_space<vmem>>, %arg2: memref<16x16xf32, #tpu.memory_space<vmem>>, %arg3: memref<16x16xf32, #tpu.memory_space<vmem>>, %arg4: memref<4x120xf32, #tpu.memory_space<vmem>>, %arg5: memref<1x120xf32, #tpu.memory_space<vmem>>, %arg6: memref<3x4x120xf32, #tpu.memory_space<vmem>>, %arg7: memref<1x120xf32, #tpu.memory_space<vmem>>, %arg8: memref<120x64xf32, #tpu.memory_space<vmem>>, %arg9: memref<120x64xf32, #tpu.memory_space<vmem>>, %arg10: memref<1x64xf32, #tpu.memory_space<vmem>>, %arg11: memref<3x120x64xf32, #tpu.memory_space<vmem>>, %arg12: memref<3x120x64xf32, #tpu.memory_space<vmem>>, %arg13: memref<1x64xf32, #tpu.memory_space<vmem>>, %arg14: memref<64x256xf32, #tpu.memory_space<vmem>>, %arg15: memref<64x256xf32, #tpu.memory_space<vmem>>, %arg16: memref<1x256xf32, #tpu.memory_space<vmem>>, %arg17: memref<64x256xf32, #tpu.memory_space<vmem>>, %arg18: memref<64x256xf32, #tpu.memory_space<vmem>>, %arg19: memref<16x256xf32, #tpu.memory_space<vmem>>, %arg20: memref<2x16xf32, #tpu.memory_space<vmem>>, %arg21: memref<256x32xf32, #tpu.memory_space<vmem>>, %arg22: memref<1x32xf32, #tpu.memory_space<vmem>>, %arg23: memref<32x32xf32, #tpu.memory_space<vmem>>, %arg24: memref<32x32xf32, #tpu.memory_space<vmem>>, %arg25: memref<1x32xf32, #tpu.memory_space<vmem>>, %arg26: memref<32x2xf32, #tpu.memory_space<vmem>>, %arg27: memref<1x2xf32, #tpu.memory_space<vmem>>, %arg28: memref<2x2xf32, #tpu.memory_space<vmem>>, %arg29: memref<16x64xf32, #tpu.memory_space<vmem>>) attributes {dimension_semantics = [], scalar_prefetch = 0 : i64, scratch_operands = 1 : i64, tpu.core_type = #tpu.core_type<tc>} {
    %c0 = arith.constant 0 : index
    %c0_0 = arith.constant 0 : index
    %0 = vector.load %arg2[%c0, %c0_0] : memref<16x16xf32, #tpu.memory_space<vmem>>, vector<16x16xf32>
    %c0_1 = arith.constant 0 : index
    %c0_2 = arith.constant 0 : index
    %1 = vector.load %arg3[%c0_1, %c0_2] : memref<16x16xf32, #tpu.memory_space<vmem>>, vector<16x16xf32>
    %c0_3 = arith.constant 0 : index
    %c0_4 = arith.constant 0 : index
    %2 = vector.load %arg1[%c0_3, %c0_4] : memref<16x4xf32, #tpu.memory_space<vmem>>, vector<16x4xf32>
    %cst = arith.constant dense<0.000000e+00> : vector<16x4xf32>
    %3 = tpu.matmul %0, %2, %cst {dimension_numbers = #tpu.dot_dimension_numbers<[1], [0], [0], [1], [0, 0, 1, 1], [], []>} : vector<16x16xf32>, vector<16x4xf32>, vector<16x4xf32> -> vector<16x4xf32>
    %cst_5 = arith.constant dense<0.000000e+00> : vector<16x4xf32>
    %4 = tpu.matmul %1, %2, %cst_5 {dimension_numbers = #tpu.dot_dimension_numbers<[1], [0], [0], [1], [0, 0, 1, 1], [], []>} : vector<16x16xf32>, vector<16x4xf32>, vector<16x4xf32> -> vector<16x4xf32>
    %c0_6 = arith.constant 0 : index
    %c0_7 = arith.constant 0 : index
    %5 = vector.load %arg4[%c0_6, %c0_7] : memref<4x120xf32, #tpu.memory_space<vmem>>, vector<4x120xf32>
    %cst_8 = arith.constant dense<0.000000e+00> : vector<16x120xf32>
    %6 = tpu.matmul %2, %5, %cst_8 {dimension_numbers = #tpu.dot_dimension_numbers<[1], [0], [0], [1], [0, 0, 1, 1], [], []>} : vector<16x4xf32>, vector<4x120xf32>, vector<16x120xf32> -> vector<16x120xf32>
    %c0_9 = arith.constant 0 : index
    %c0_10 = arith.constant 0 : index
    %7 = vector.load %arg5[%c0_9, %c0_10] : memref<1x120xf32, #tpu.memory_space<vmem>>, vector<1x120xf32>
    %8 = vector.broadcast %7 : vector<1x120xf32> to vector<16x120xf32>
    %9 = arith.addf %6, %8 : vector<16x120xf32>
    %c0_11 = arith.constant 0 : index
    %c0_12 = arith.constant 0 : index
    %c0_13 = arith.constant 0 : index
    %10 = vector.load %arg6[%c0_11, %c0_12, %c0_13] : memref<3x4x120xf32, #tpu.memory_space<vmem>>, vector<1x4x120xf32>
    %11 = vector.shape_cast %10 : vector<1x4x120xf32> to vector<4x120xf32>
    %cst_14 = arith.constant dense<0.000000e+00> : vector<16x120xf32>
    %12 = tpu.matmul %3, %11, %cst_14 {dimension_numbers = #tpu.dot_dimension_numbers<[1], [0], [0], [1], [0, 0, 1, 1], [], []>} : vector<16x4xf32>, vector<4x120xf32>, vector<16x120xf32> -> vector<16x120xf32>
    %c1 = arith.constant 1 : index
    %c0_15 = arith.constant 0 : index
    %c0_16 = arith.constant 0 : index
    %13 = vector.load %arg6[%c1, %c0_15, %c0_16] : memref<3x4x120xf32, #tpu.memory_space<vmem>>, vector<1x4x120xf32>
    %14 = vector.shape_cast %13 : vector<1x4x120xf32> to vector<4x120xf32>
    %cst_17 = arith.constant dense<0.000000e+00> : vector<16x120xf32>
    %15 = tpu.matmul %2, %14, %cst_17 {dimension_numbers = #tpu.dot_dimension_numbers<[1], [0], [0], [1], [0, 0, 1, 1], [], []>} : vector<16x4xf32>, vector<4x120xf32>, vector<16x120xf32> -> vector<16x120xf32>
    %16 = arith.addf %12, %15 : vector<16x120xf32>
    %c2 = arith.constant 2 : index
    %c0_18 = arith.constant 0 : index
    %c0_19 = arith.constant 0 : index
    %17 = vector.load %arg6[%c2, %c0_18, %c0_19] : memref<3x4x120xf32, #tpu.memory_space<vmem>>, vector<1x4x120xf32>
    %18 = vector.shape_cast %17 : vector<1x4x120xf32> to vector<4x120xf32>
    %cst_20 = arith.constant dense<0.000000e+00> : vector<16x120xf32>
    %19 = tpu.matmul %4, %18, %cst_20 {dimension_numbers = #tpu.dot_dimension_numbers<[1], [0], [0], [1], [0, 0, 1, 1], [], []>} : vector<16x4xf32>, vector<4x120xf32>, vector<16x120xf32> -> vector<16x120xf32>
    %20 = arith.addf %16, %19 : vector<16x120xf32>
    %c0_21 = arith.constant 0 : index
    %c0_22 = arith.constant 0 : index
    %21 = vector.load %arg7[%c0_21, %c0_22] : memref<1x120xf32, #tpu.memory_space<vmem>>, vector<1x120xf32>
    %22 = vector.broadcast %21 : vector<1x120xf32> to vector<16x120xf32>
    %23 = arith.addf %20, %22 : vector<16x120xf32>
    %cst_23 = arith.constant dense<0.000000e+00> : vector<16x120xf32>
    %24 = tpu.matmul %0, %9, %cst_23 {dimension_numbers = #tpu.dot_dimension_numbers<[1], [0], [0], [1], [0, 0, 1, 1], [], []>} : vector<16x16xf32>, vector<16x120xf32>, vector<16x120xf32> -> vector<16x120xf32>
    %cst_24 = arith.constant dense<0.000000e+00> : vector<16x120xf32>
    %25 = tpu.matmul %1, %9, %cst_24 {dimension_numbers = #tpu.dot_dimension_numbers<[1], [0], [0], [1], [0, 0, 1, 1], [], []>} : vector<16x16xf32>, vector<16x120xf32>, vector<16x120xf32> -> vector<16x120xf32>
    %cst_25 = arith.constant dense<0.000000e+00> : vector<16x120xf32>
    %26 = tpu.matmul %0, %23, %cst_25 {dimension_numbers = #tpu.dot_dimension_numbers<[1], [0], [0], [1], [0, 0, 1, 1], [], []>} : vector<16x16xf32>, vector<16x120xf32>, vector<16x120xf32> -> vector<16x120xf32>
    %cst_26 = arith.constant dense<0.000000e+00> : vector<16x120xf32>
    %27 = tpu.matmul %1, %23, %cst_26 {dimension_numbers = #tpu.dot_dimension_numbers<[1], [0], [0], [1], [0, 0, 1, 1], [], []>} : vector<16x16xf32>, vector<16x120xf32>, vector<16x120xf32> -> vector<16x120xf32>
    %c0_27 = arith.constant 0 : index
    %c0_28 = arith.constant 0 : index
    %28 = vector.load %arg8[%c0_27, %c0_28] : memref<120x64xf32, #tpu.memory_space<vmem>>, vector<120x64xf32>
    %cst_29 = arith.constant dense<0.000000e+00> : vector<16x64xf32>
    %29 = tpu.matmul %9, %28, %cst_29 {dimension_numbers = #tpu.dot_dimension_numbers<[1], [0], [0], [1], [0, 0, 1, 1], [], []>} : vector<16x120xf32>, vector<120x64xf32>, vector<16x64xf32> -> vector<16x64xf32>
    %c0_30 = arith.constant 0 : index
    %c0_31 = arith.constant 0 : index
    %30 = vector.load %arg9[%c0_30, %c0_31] : memref<120x64xf32, #tpu.memory_space<vmem>>, vector<120x64xf32>
    %cst_32 = arith.constant dense<0.000000e+00> : vector<16x64xf32>
    %31 = tpu.matmul %23, %30, %cst_32 {dimension_numbers = #tpu.dot_dimension_numbers<[1], [0], [0], [1], [0, 0, 1, 1], [], []>} : vector<16x120xf32>, vector<120x64xf32>, vector<16x64xf32> -> vector<16x64xf32>
    %32 = arith.addf %29, %31 : vector<16x64xf32>
    %c0_33 = arith.constant 0 : index
    %c0_34 = arith.constant 0 : index
    %33 = vector.load %arg10[%c0_33, %c0_34] : memref<1x64xf32, #tpu.memory_space<vmem>>, vector<1x64xf32>
    %34 = vector.broadcast %33 : vector<1x64xf32> to vector<16x64xf32>
    %35 = arith.addf %32, %34 : vector<16x64xf32>
    %c0_35 = arith.constant 0 : index
    %c0_36 = arith.constant 0 : index
    %c0_37 = arith.constant 0 : index
    %36 = vector.load %arg11[%c0_35, %c0_36, %c0_37] : memref<3x120x64xf32, #tpu.memory_space<vmem>>, vector<1x120x64xf32>
    %37 = vector.shape_cast %36 : vector<1x120x64xf32> to vector<120x64xf32>
    %cst_38 = arith.constant dense<0.000000e+00> : vector<16x64xf32>
    %38 = tpu.matmul %24, %37, %cst_38 {dimension_numbers = #tpu.dot_dimension_numbers<[1], [0], [0], [1], [0, 0, 1, 1], [], []>} : vector<16x120xf32>, vector<120x64xf32>, vector<16x64xf32> -> vector<16x64xf32>
    %c0_39 = arith.constant 0 : index
    %c0_40 = arith.constant 0 : index
    %c0_41 = arith.constant 0 : index
    %39 = vector.load %arg12[%c0_39, %c0_40, %c0_41] : memref<3x120x64xf32, #tpu.memory_space<vmem>>, vector<1x120x64xf32>
    %40 = vector.shape_cast %39 : vector<1x120x64xf32> to vector<120x64xf32>
    %cst_42 = arith.constant dense<0.000000e+00> : vector<16x64xf32>
    %41 = tpu.matmul %26, %40, %cst_42 {dimension_numbers = #tpu.dot_dimension_numbers<[1], [0], [0], [1], [0, 0, 1, 1], [], []>} : vector<16x120xf32>, vector<120x64xf32>, vector<16x64xf32> -> vector<16x64xf32>
    %42 = arith.addf %38, %41 : vector<16x64xf32>
    %c1_43 = arith.constant 1 : index
    %c0_44 = arith.constant 0 : index
    %c0_45 = arith.constant 0 : index
    %43 = vector.load %arg11[%c1_43, %c0_44, %c0_45] : memref<3x120x64xf32, #tpu.memory_space<vmem>>, vector<1x120x64xf32>
    %44 = vector.shape_cast %43 : vector<1x120x64xf32> to vector<120x64xf32>
    %cst_46 = arith.constant dense<0.000000e+00> : vector<16x64xf32>
    %45 = tpu.matmul %9, %44, %cst_46 {dimension_numbers = #tpu.dot_dimension_numbers<[1], [0], [0], [1], [0, 0, 1, 1], [], []>} : vector<16x120xf32>, vector<120x64xf32>, vector<16x64xf32> -> vector<16x64xf32>
    %46 = arith.addf %42, %45 : vector<16x64xf32>
    %c1_47 = arith.constant 1 : index
    %c0_48 = arith.constant 0 : index
    %c0_49 = arith.constant 0 : index
    %47 = vector.load %arg12[%c1_47, %c0_48, %c0_49] : memref<3x120x64xf32, #tpu.memory_space<vmem>>, vector<1x120x64xf32>
    %48 = vector.shape_cast %47 : vector<1x120x64xf32> to vector<120x64xf32>
    %cst_50 = arith.constant dense<0.000000e+00> : vector<16x64xf32>
    %49 = tpu.matmul %23, %48, %cst_50 {dimension_numbers = #tpu.dot_dimension_numbers<[1], [0], [0], [1], [0, 0, 1, 1], [], []>} : vector<16x120xf32>, vector<120x64xf32>, vector<16x64xf32> -> vector<16x64xf32>
    %50 = arith.addf %46, %49 : vector<16x64xf32>
    %c2_51 = arith.constant 2 : index
    %c0_52 = arith.constant 0 : index
    %c0_53 = arith.constant 0 : index
    %51 = vector.load %arg11[%c2_51, %c0_52, %c0_53] : memref<3x120x64xf32, #tpu.memory_space<vmem>>, vector<1x120x64xf32>
    %52 = vector.shape_cast %51 : vector<1x120x64xf32> to vector<120x64xf32>
    %cst_54 = arith.constant dense<0.000000e+00> : vector<16x64xf32>
    %53 = tpu.matmul %25, %52, %cst_54 {dimension_numbers = #tpu.dot_dimension_numbers<[1], [0], [0], [1], [0, 0, 1, 1], [], []>} : vector<16x120xf32>, vector<120x64xf32>, vector<16x64xf32> -> vector<16x64xf32>
    %54 = arith.addf %50, %53 : vector<16x64xf32>
    %c2_55 = arith.constant 2 : index
    %c0_56 = arith.constant 0 : index
    %c0_57 = arith.constant 0 : index
    %55 = vector.load %arg12[%c2_55, %c0_56, %c0_57] : memref<3x120x64xf32, #tpu.memory_space<vmem>>, vector<1x120x64xf32>
    %56 = vector.shape_cast %55 : vector<1x120x64xf32> to vector<120x64xf32>
    %cst_58 = arith.constant dense<0.000000e+00> : vector<16x64xf32>
    %57 = tpu.matmul %27, %56, %cst_58 {dimension_numbers = #tpu.dot_dimension_numbers<[1], [0], [0], [1], [0, 0, 1, 1], [], []>} : vector<16x120xf32>, vector<120x64xf32>, vector<16x64xf32> -> vector<16x64xf32>
    %58 = arith.addf %54, %57 : vector<16x64xf32>
    %c0_59 = arith.constant 0 : index
    %c0_60 = arith.constant 0 : index
    %59 = vector.load %arg13[%c0_59, %c0_60] : memref<1x64xf32, #tpu.memory_space<vmem>>, vector<1x64xf32>
    %60 = vector.broadcast %59 : vector<1x64xf32> to vector<16x64xf32>
    %61 = arith.addf %58, %60 : vector<16x64xf32>
    %c0_61 = arith.constant 0 : index
    %c0_62 = arith.constant 0 : index
    %62 = vector.load %arg14[%c0_61, %c0_62] : memref<64x256xf32, #tpu.memory_space<vmem>>, vector<64x256xf32>
    %cst_63 = arith.constant dense<0.000000e+00> : vector<16x256xf32>
    %63 = tpu.matmul %35, %62, %cst_63 {dimension_numbers = #tpu.dot_dimension_numbers<[1], [0], [0], [1], [0, 0, 1, 1], [], []>} : vector<16x64xf32>, vector<64x256xf32>, vector<16x256xf32> -> vector<16x256xf32>
    %c0_64 = arith.constant 0 : index
    %c0_65 = arith.constant 0 : index
    %64 = vector.load %arg15[%c0_64, %c0_65] : memref<64x256xf32, #tpu.memory_space<vmem>>, vector<64x256xf32>
    %cst_66 = arith.constant dense<0.000000e+00> : vector<16x256xf32>
    %65 = tpu.matmul %61, %64, %cst_66 {dimension_numbers = #tpu.dot_dimension_numbers<[1], [0], [0], [1], [0, 0, 1, 1], [], []>} : vector<16x64xf32>, vector<64x256xf32>, vector<16x256xf32> -> vector<16x256xf32>
    %66 = arith.addf %63, %65 : vector<16x256xf32>
    %c0_67 = arith.constant 0 : index
    %c0_68 = arith.constant 0 : index
    %67 = vector.load %arg16[%c0_67, %c0_68] : memref<1x256xf32, #tpu.memory_space<vmem>>, vector<1x256xf32>
    %68 = vector.broadcast %67 : vector<1x256xf32> to vector<16x256xf32>
    %69 = arith.addf %66, %68 : vector<16x256xf32>
    %c0_69 = arith.constant 0 : index
    %c0_70 = arith.constant 0 : index
    %70 = vector.load %arg17[%c0_69, %c0_70] : memref<64x256xf32, #tpu.memory_space<vmem>>, vector<64x256xf32>
    %cst_71 = arith.constant 0.000000e+00 : f32
    %71 = vector.broadcast %cst_71 : f32 to vector<8x64xf32>
    %cst_72 = arith.constant 0.000000e+00 : f32
    %72 = vector.broadcast %cst_72 : f32 to vector<8x64xf32>
    %73 = vector.extract_strided_slice %69 {offsets = [0, 0], sizes = [8, 256], strides = [1, 1]} : vector<16x256xf32> to vector<8x256xf32>
    %cst_73 = arith.constant dense<0.000000e+00> : vector<8x256xf32>
    %74 = tpu.matmul %71, %70, %cst_73 {dimension_numbers = #tpu.dot_dimension_numbers<[1], [0], [0], [1], [0, 0, 1, 1], [], []>} : vector<8x64xf32>, vector<64x256xf32>, vector<8x256xf32> -> vector<8x256xf32>
    %75 = arith.addf %73, %74 : vector<8x256xf32>
    %76 = vector.extract_strided_slice %75 {offsets = [0, 0], sizes = [8, 64], strides = [1, 1]} : vector<8x256xf32> to vector<8x64xf32>
    %77 = arith.negf %76 : vector<8x64xf32>
    %78 = math.exp %77 : vector<8x64xf32>
    %cst_74 = arith.constant 1.000000e+00 : f32
    %79 = vector.broadcast %cst_74 : f32 to vector<8x64xf32>
    %80 = arith.addf %79, %78 : vector<8x64xf32>
    %81 = arith.divf %79, %80 : vector<8x64xf32>
    %82 = vector.extract_strided_slice %75 {offsets = [0, 64], sizes = [8, 64], strides = [1, 1]} : vector<8x256xf32> to vector<8x64xf32>
    %83 = arith.negf %82 : vector<8x64xf32>
    %84 = math.exp %83 : vector<8x64xf32>
    %cst_75 = arith.constant 1.000000e+00 : f32
    %85 = vector.broadcast %cst_75 : f32 to vector<8x64xf32>
    %86 = arith.addf %85, %84 : vector<8x64xf32>
    %87 = arith.divf %85, %86 : vector<8x64xf32>
    %88 = vector.extract_strided_slice %75 {offsets = [0, 128], sizes = [8, 64], strides = [1, 1]} : vector<8x256xf32> to vector<8x64xf32>
    %89 = math.tanh %88 : vector<8x64xf32>
    %90 = vector.extract_strided_slice %75 {offsets = [0, 192], sizes = [8, 64], strides = [1, 1]} : vector<8x256xf32> to vector<8x64xf32>
    %91 = arith.negf %90 : vector<8x64xf32>
    %92 = math.exp %91 : vector<8x64xf32>
    %cst_76 = arith.constant 1.000000e+00 : f32
    %93 = vector.broadcast %cst_76 : f32 to vector<8x64xf32>
    %94 = arith.addf %93, %92 : vector<8x64xf32>
    %95 = arith.divf %93, %94 : vector<8x64xf32>
    %96 = arith.mulf %87, %72 : vector<8x64xf32>
    %97 = arith.mulf %81, %89 : vector<8x64xf32>
    %98 = arith.addf %96, %97 : vector<8x64xf32>
    %99 = math.tanh %98 : vector<8x64xf32>
    %100 = arith.mulf %95, %99 : vector<8x64xf32>
    %c0_77 = arith.constant 0 : index
    %c0_78 = arith.constant 0 : index
    %101 = vector.load %arg29[%c0_77, %c0_78] : memref<16x64xf32, #tpu.memory_space<vmem>>, vector<8x64xf32>
    tpu.vector_store %arg29[%c0_77, %c0_78], %100 {strides = array<i32>} : memref<16x64xf32, #tpu.memory_space<vmem>>, vector<8x64xf32>,
    %102 = vector.extract_strided_slice %69 {offsets = [8, 0], sizes = [8, 256], strides = [1, 1]} : vector<16x256xf32> to vector<8x256xf32>
    %cst_79 = arith.constant dense<0.000000e+00> : vector<8x256xf32>
    %103 = tpu.matmul %100, %70, %cst_79 {dimension_numbers = #tpu.dot_dimension_numbers<[1], [0], [0], [1], [0, 0, 1, 1], [], []>} : vector<8x64xf32>, vector<64x256xf32>, vector<8x256xf32> -> vector<8x256xf32>
    %104 = arith.addf %102, %103 : vector<8x256xf32>
    %105 = vector.extract_strided_slice %104 {offsets = [0, 0], sizes = [8, 64], strides = [1, 1]} : vector<8x256xf32> to vector<8x64xf32>
    %106 = arith.negf %105 : vector<8x64xf32>
    %107 = math.exp %106 : vector<8x64xf32>
    %cst_80 = arith.constant 1.000000e+00 : f32
    %108 = vector.broadcast %cst_80 : f32 to vector<8x64xf32>
    %109 = arith.addf %108, %107 : vector<8x64xf32>
    %110 = arith.divf %108, %109 : vector<8x64xf32>
    %111 = vector.extract_strided_slice %104 {offsets = [0, 64], sizes = [8, 64], strides = [1, 1]} : vector<8x256xf32> to vector<8x64xf32>
    %112 = arith.negf %111 : vector<8x64xf32>
    %113 = math.exp %112 : vector<8x64xf32>
    %cst_81 = arith.constant 1.000000e+00 : f32
    %114 = vector.broadcast %cst_81 : f32 to vector<8x64xf32>
    %115 = arith.addf %114, %113 : vector<8x64xf32>
    %116 = arith.divf %114, %115 : vector<8x64xf32>
    %117 = vector.extract_strided_slice %104 {offsets = [0, 128], sizes = [8, 64], strides = [1, 1]} : vector<8x256xf32> to vector<8x64xf32>
    %118 = math.tanh %117 : vector<8x64xf32>
    %119 = vector.extract_strided_slice %104 {offsets = [0, 192], sizes = [8, 64], strides = [1, 1]} : vector<8x256xf32> to vector<8x64xf32>
    %120 = arith.negf %119 : vector<8x64xf32>
    %121 = math.exp %120 : vector<8x64xf32>
    %cst_82 = arith.constant 1.000000e+00 : f32
    %122 = vector.broadcast %cst_82 : f32 to vector<8x64xf32>
    %123 = arith.addf %122, %121 : vector<8x64xf32>
    %124 = arith.divf %122, %123 : vector<8x64xf32>
    %125 = arith.mulf %116, %98 : vector<8x64xf32>
    %126 = arith.mulf %110, %118 : vector<8x64xf32>
    %127 = arith.addf %125, %126 : vector<8x64xf32>
    %128 = math.tanh %127 : vector<8x64xf32>
    %129 = arith.mulf %124, %128 : vector<8x64xf32>
    %c8 = arith.constant 8 : index
    %c0_83 = arith.constant 0 : index
    %130 = vector.load %arg29[%c8, %c0_83] : memref<16x64xf32, #tpu.memory_space<vmem>>, vector<8x64xf32>
    tpu.vector_store %arg29[%c8, %c0_83], %129 {strides = array<i32>} : memref<16x64xf32, #tpu.memory_space<vmem>>, vector<8x64xf32>,
    %c0_84 = arith.constant 0 : index
    %c0_85 = arith.constant 0 : index
    %131 = vector.load %arg29[%c0_84, %c0_85] : memref<16x64xf32, #tpu.memory_space<vmem>>, vector<16x64xf32>
    %c0_86 = arith.constant 0 : index
    %c0_87 = arith.constant 0 : index
    %132 = vector.load %arg18[%c0_86, %c0_87] : memref<64x256xf32, #tpu.memory_space<vmem>>, vector<64x256xf32>
    %cst_88 = arith.constant dense<0.000000e+00> : vector<16x256xf32>
    %133 = tpu.matmul %131, %132, %cst_88 {dimension_numbers = #tpu.dot_dimension_numbers<[1], [0], [0], [1], [0, 0, 1, 1], [], []>} : vector<16x64xf32>, vector<64x256xf32>, vector<16x256xf32> -> vector<16x256xf32>
    %c0_89 = arith.constant 0 : index
    %c0_90 = arith.constant 0 : index
    %134 = vector.load %arg19[%c0_89, %c0_90] : memref<16x256xf32, #tpu.memory_space<vmem>>, vector<16x256xf32>
    %135 = arith.mulf %133, %134 : vector<16x256xf32>
    %c0_91 = arith.constant 0 : index
    %c0_92 = arith.constant 0 : index
    %136 = vector.load %arg20[%c0_91, %c0_92] : memref<2x16xf32, #tpu.memory_space<vmem>>, vector<2x16xf32>
    %cst_93 = arith.constant dense<0.000000e+00> : vector<2x256xf32>
    %137 = tpu.matmul %136, %135, %cst_93 {dimension_numbers = #tpu.dot_dimension_numbers<[1], [0], [0], [1], [0, 0, 1, 1], [], []>} : vector<2x16xf32>, vector<16x256xf32>, vector<2x256xf32> -> vector<2x256xf32>
    %c0_94 = arith.constant 0 : index
    %c0_95 = arith.constant 0 : index
    %138 = vector.load %arg21[%c0_94, %c0_95] : memref<256x32xf32, #tpu.memory_space<vmem>>, vector<256x32xf32>
    %cst_96 = arith.constant dense<0.000000e+00> : vector<2x32xf32>
    %139 = tpu.matmul %137, %138, %cst_96 {dimension_numbers = #tpu.dot_dimension_numbers<[1], [0], [0], [1], [0, 0, 1, 1], [], []>} : vector<2x256xf32>, vector<256x32xf32>, vector<2x32xf32> -> vector<2x32xf32>
    %c0_97 = arith.constant 0 : index
    %c0_98 = arith.constant 0 : index
    %140 = vector.load %arg22[%c0_97, %c0_98] : memref<1x32xf32, #tpu.memory_space<vmem>>, vector<1x32xf32>
    %141 = vector.broadcast %140 : vector<1x32xf32> to vector<2x32xf32>
    %142 = arith.addf %139, %141 : vector<2x32xf32>
    %c0_99 = arith.constant 0 : index
    %c0_100 = arith.constant 0 : index
    %143 = vector.load %arg0[%c0_99, %c0_100] : memref<2x32xf32, #tpu.memory_space<vmem>>, vector<2x32xf32>
    %c0_101 = arith.constant 0 : index
    %c0_102 = arith.constant 0 : index
    %144 = vector.load %arg23[%c0_101, %c0_102] : memref<32x32xf32, #tpu.memory_space<vmem>>, vector<32x32xf32>
    %cst_103 = arith.constant dense<0.000000e+00> : vector<2x32xf32>
    %145 = tpu.matmul %143, %144, %cst_103 {dimension_numbers = #tpu.dot_dimension_numbers<[1], [0], [0], [1], [0, 0, 1, 1], [], []>} : vector<2x32xf32>, vector<32x32xf32>, vector<2x32xf32> -> vector<2x32xf32>
    %c0_104 = arith.constant 0 : index
    %c0_105 = arith.constant 0 : index
    %146 = vector.load %arg24[%c0_104, %c0_105] : memref<32x32xf32, #tpu.memory_space<vmem>>, vector<32x32xf32>
    %cst_106 = arith.constant dense<0.000000e+00> : vector<2x32xf32>
    %147 = tpu.matmul %142, %146, %cst_106 {dimension_numbers = #tpu.dot_dimension_numbers<[1], [0], [0], [1], [0, 0, 1, 1], [], []>} : vector<2x32xf32>, vector<32x32xf32>, vector<2x32xf32> -> vector<2x32xf32>
    %148 = arith.addf %145, %147 : vector<2x32xf32>
    %c0_107 = arith.constant 0 : index
    %c0_108 = arith.constant 0 : index
    %149 = vector.load %arg25[%c0_107, %c0_108] : memref<1x32xf32, #tpu.memory_space<vmem>>, vector<1x32xf32>
    %150 = vector.broadcast %149 : vector<1x32xf32> to vector<2x32xf32>
    %151 = arith.addf %148, %150 : vector<2x32xf32>
    %c0_109 = arith.constant 0 : index
    %c0_110 = arith.constant 0 : index
    %152 = vector.load %arg26[%c0_109, %c0_110] : memref<32x2xf32, #tpu.memory_space<vmem>>, vector<32x2xf32>
    %cst_111 = arith.constant dense<0.000000e+00> : vector<2x2xf32>
    %153 = tpu.matmul %151, %152, %cst_111 {dimension_numbers = #tpu.dot_dimension_numbers<[1], [0], [0], [1], [0, 0, 1, 1], [], []>} : vector<2x32xf32>, vector<32x2xf32>, vector<2x2xf32> -> vector<2x2xf32>
    %c0_112 = arith.constant 0 : index
    %c0_113 = arith.constant 0 : index
    %154 = vector.load %arg27[%c0_112, %c0_113] : memref<1x2xf32, #tpu.memory_space<vmem>>, vector<1x2xf32>
    %155 = vector.broadcast %154 : vector<1x2xf32> to vector<2x2xf32>
    %156 = arith.addf %153, %155 : vector<2x2xf32>
    %cst_114 = arith.constant dense<0xFF800000> : vector<2xf32>
    %157 = vector.multi_reduction <maximumf>, %156, %cst_114 [1] : vector<2x2xf32> to vector<2xf32>
    %158 = vector.shape_cast %157 : vector<2xf32> to vector<2x1xf32>
    %159 = vector.broadcast %158 : vector<2x1xf32> to vector<2x2xf32>
    %160 = arith.subf %156, %159 : vector<2x2xf32>
    %161 = math.exp %160 : vector<2x2xf32>
    %cst_115 = arith.constant dense<0.000000e+00> : vector<2xf32>
    %162 = vector.multi_reduction <add>, %161, %cst_115 [1] : vector<2x2xf32> to vector<2xf32>
    %163 = vector.shape_cast %162 : vector<2xf32> to vector<2x1xf32>
    %164 = vector.broadcast %163 : vector<2x1xf32> to vector<2x2xf32>
    %165 = arith.divf %161, %164 : vector<2x2xf32>
    %c0_116 = arith.constant 0 : index
    %c0_117 = arith.constant 0 : index
    %166 = vector.load %arg28[%c0_116, %c0_117] : memref<2x2xf32, #tpu.memory_space<vmem>>, vector<2x2xf32>
    tpu.vector_store %arg28[%c0_116, %c0_117], %165 {strides = array<i32>} : memref<2x2xf32, #tpu.memory_space<vmem>>, vector<2x2xf32>,
    return
  }
}

</mosaic_0001>

<llo_original>
// kernel: lstm6_forward.2
$region0: #{lstm6_forward.2}
  #allocation0 [shape = 'u32[]', space=smem, size = 0x4, offset = 0x4, fixed_abs, tag = 'smem constant byte address 0x4 - core index']
  #allocation1 [shape = 'u32[72,128]{1,0:T(1,128)}', space=vmem, size = 0x9000, scoped, tag = 'internal scratch']
  %s0 = inlined_call_operand.vmem [shape: f32[10,20], index: 0, kind: input, shape index: {}]
  %s1 = inlined_call_operand.vmem [shape: f32[10,10], index: 1, kind: input, shape index: {}]
  %s2 = inlined_call_operand.vmem [shape: f32[10,10], index: 2, kind: input, shape index: {}]
  %s3 = inlined_call_operand.vmem [shape: f32[3,20,16], index: 3, kind: input, shape index: {}]
  %s4 = inlined_call_operand.vmem [shape: f32[1,16], index: 4, kind: input, shape index: {}]
  %s5 = inlined_call_operand.vmem [shape: f32[3,16,32], index: 5, kind: input, shape index: {}]
  %s6 = inlined_call_operand.vmem [shape: f32[1,32], index: 6, kind: input, shape index: {}]
  %s7 = inlined_call_operand.vmem [shape: f32[3,32,64], index: 7, kind: input, shape index: {}]
  %s8 = inlined_call_operand.vmem [shape: f32[1,64], index: 8, kind: input, shape index: {}]
  %s9 = inlined_call_operand.vmem [shape: f32[64,160], index: 9, kind: input, shape index: {}]
  %s10 = inlined_call_operand.vmem [shape: f32[10,160], index: 10, kind: input, shape index: {}]
  %s11 = inlined_call_operand.vmem [shape: f32[2,10], index: 11, kind: input, shape index: {}]
  %s12 = inlined_call_operand.vmem [shape: f32[160,32], index: 12, kind: input, shape index: {}]
  %s13 = inlined_call_operand.vmem [shape: f32[1,32], index: 13, kind: input, shape index: {}]
  %s14 = inlined_call_operand.vmem [shape: f32[2,32], index: 14, kind: output, shape index: {}]
  %s15 = sld [smem:[#allocation0]]
  $region66: #{lstm6_forward.2} parent=0
    _
  %s17 = ssub.s32 1, %s15
  %s18 = scalar_select 0, %s17, %s15
  // Predicated region
  $region2: #{lstm6_forward.2} parent=0 // pred_check
    _
  $region3: #{lstm6_forward.2} parent=0 // pred_check_branch
    %20 = sbr.rel (0) target = $region5
  $region4: #{lstm6_forward.2} parent=0 // pred_region
    _
  $region5: #{lstm6_forward.2} parent=0 // pred_fallthru
    _
  // Predicated region
  $region6: #{lstm6_forward.2} parent=0 // pred_check
    _
  $region7: #{lstm6_forward.2} parent=0 // pred_check_branch
    %22 = sbr.rel (0) target = $region9
  $region8: #{lstm6_forward.2} parent=0 // pred_region
    _
  $region9: #{lstm6_forward.2} parent=0 // pred_fallthru
    _
  // Predicated region
  $region10: #{lstm6_forward.2} parent=0 // pred_check
    _
  $region11: #{lstm6_forward.2} parent=0 // pred_check_branch
    %24 = sbr.rel (0) target = $region13
  $region12: #{lstm6_forward.2} parent=0 // pred_region
    _
  $region13: #{lstm6_forward.2} parent=0 // pred_fallthru
    _
  // Predicated region
  $region14: #{lstm6_forward.2} parent=0 // pred_check
    _
  $region15: #{lstm6_forward.2} parent=0 // pred_check_branch
    %26 = sbr.rel (0) target = $region17
  $region16: #{lstm6_forward.2} parent=0 // pred_region
    _
  $region17: #{lstm6_forward.2} parent=0 // pred_fallthru
    _
  // Predicated region
  $region18: #{lstm6_forward.2} parent=0 // pred_check
    _
  $region19: #{lstm6_forward.2} parent=0 // pred_check_branch
    %28 = sbr.rel (0) target = $region21
  $region20: #{lstm6_forward.2} parent=0 // pred_region
    _
  $region21: #{lstm6_forward.2} parent=0 // pred_fallthru
    _
  // Predicated region
  $region22: #{lstm6_forward.2} parent=0 // pred_check
    _
  $region23: #{lstm6_forward.2} parent=0 // pred_check_branch
    %30 = sbr.rel (0) target = $region25
  $region24: #{lstm6_forward.2} parent=0 // pred_region
    _
  $region25: #{lstm6_forward.2} parent=0 // pred_fallthru
    _
  // Predicated region
  $region26: #{lstm6_forward.2} parent=0 // pred_check
    _
  $region27: #{lstm6_forward.2} parent=0 // pred_check_branch
    %32 = sbr.rel (0) target = $region29
  $region28: #{lstm6_forward.2} parent=0 // pred_region
    _
  $region29: #{lstm6_forward.2} parent=0 // pred_fallthru
    _
  // Predicated region
  $region30: #{lstm6_forward.2} parent=0 // pred_check
    _
  $region31: #{lstm6_forward.2} parent=0 // pred_check_branch
    %34 = sbr.rel (0) target = $region33
  $region32: #{lstm6_forward.2} parent=0 // pred_region
    _
  $region33: #{lstm6_forward.2} parent=0 // pred_fallthru
    _
  // Predicated region
  $region34: #{lstm6_forward.2} parent=0 // pred_check
    _
  $region35: #{lstm6_forward.2} parent=0 // pred_check_branch
    %36 = sbr.rel (0) target = $region37
  $region36: #{lstm6_forward.2} parent=0 // pred_region
    _
  $region37: #{lstm6_forward.2} parent=0 // pred_fallthru
    _
  // Predicated region
  $region38: #{lstm6_forward.2} parent=0 // pred_check
    _
  $region39: #{lstm6_forward.2} parent=0 // pred_check_branch
    %38 = sbr.rel (0) target = $region41
  $region40: #{lstm6_forward.2} parent=0 // pred_region
    _
  $region41: #{lstm6_forward.2} parent=0 // pred_fallthru
    _
  // Predicated region
  $region42: #{lstm6_forward.2} parent=0 // pred_check
    _
  $region43: #{lstm6_forward.2} parent=0 // pred_check_branch
    %40 = sbr.rel (0) target = $region45
  $region44: #{lstm6_forward.2} parent=0 // pred_region
    _
  $region45: #{lstm6_forward.2} parent=0 // pred_fallthru
    _
  // Predicated region
  $region46: #{lstm6_forward.2} parent=0 // pred_check
    _
  $region47: #{lstm6_forward.2} parent=0 // pred_check_branch
    %42 = sbr.rel (0) target = $region49
  $region48: #{lstm6_forward.2} parent=0 // pred_region
    _
  $region49: #{lstm6_forward.2} parent=0 // pred_fallthru
    _
  // Predicated region
  $region50: #{lstm6_forward.2} parent=0 // pred_check
    _
  $region51: #{lstm6_forward.2} parent=0 // pred_check_branch
    %44 = sbr.rel (0) target = $region53
  $region52: #{lstm6_forward.2} parent=0 // pred_region
    _
  $region53: #{lstm6_forward.2} parent=0 // pred_fallthru
    _
  // Predicated region
  $region54: #{lstm6_forward.2} parent=0 // pred_check
    _
  $region55: #{lstm6_forward.2} parent=0 // pred_check_branch
    %46 = sbr.rel (0) target = $region57
  $region56: #{lstm6_forward.2} parent=0 // pred_region
    _
  $region57: #{lstm6_forward.2} parent=0 // pred_fallthru
    _
  %v47 = vld [vmem:[%s1] sm:$0xff]
  %v48 = vld [vmem:[%s1 + $0x8] sm:$0x3]
  %v49 = vld [vmem:[%s2] sm:$0xff]
  %v50 = vld [vmem:[%s2 + $0x8] sm:$0x3]
  %v51 = vld [vmem:[%s0] sm:$0xff]
  %v52 = vld [vmem:[%s0 + $0x8] sm:$0x3]
  %vm53 = vcmask 80896
  %v55 = vsel %vm53, %v47, 0
  %v58 = vsel %vm53, %v48, 0
  %vm60 = vcmask 1041408
  %v62 = vsel %vm60, %v52, 0
  %64 = vmatpush.msra.mxu0 0.0
  %65 = vmatpush.msra.mxu0 0.0
  %66 = vmatpush.msra.mxu0 0.0
  %67 = vmatpush.msra.mxu0 0.0
  %68 = vmatpush.msra.mxu0 0.0
  %69 = vmatpush.msra.mxu0 0.0
  %70 = vmatpush.msra.mxu0 0.0
  %71 = vmatpush.msra.mxu0 0.0
  %72 = vmatpush.msra.mxu0 0.0
  %73 = vmatpush.msra.mxu0 0.0
  %74 = vmatpush.msra.mxu0 0.0
  %75 = vmatpush.msra.mxu0 0.0
  %76 = vmatpush.msra.mxu0 0.0
  %77 = vmatpush.msra.mxu0 0.0
  %78 = vmatpush.msra.mxu0 %v62
  %79 = vmatpush.msra.mxu0 %v51
  %80 = vmatmul.f32.gmra.mxu0 %v55
  %v81 = vpop.f32.mrf.mxu0
  %v82 = vadd.f32 0.0, %v81
  %83 = vmatmul.f32.gmra.mxu0 %v58
  %v84 = vpop.f32.mrf.mxu0
  %v85 = vadd.f32 0.0, %v84
  %86 = vdwg.mxu0
  %v87 = vld [vmem:[%s3] sm:$0xff]
  %v88 = vld [vmem:[%s3 + $0x8] sm:$0xff]
  %v89 = vld [vmem:[%s3 + $0x10] sm:$0xf]
  %s90 = scalar_lea.vmem %s3, 24
  %v91 = vld [vmem:[%s90] sm:$0xff]
  %v92 = vld [vmem:[%s90 + $0x8] sm:$0xff]
  %v93 = vld [vmem:[%s90 + $0x10] sm:$0xf]
  %vm94 = vcmask 162816
  %v96 = vsel %vm94, %v51, 0
  %v98 = vsel %vm94, %v52, 0
  %vm100 = vcmask 1043456
  %v102 = vsel %vm100, %v93, 0
  %104 = vmatpush.msra.mxu0 0.0
  %105 = vmatpush.msra.mxu0 0.0
  %106 = vmatpush.msra.mxu0 0.0
  %107 = vmatpush.msra.mxu0 0.0
  %108 = vmatpush.msra.mxu0 0.0
  %109 = vmatpush.msra.mxu0 0.0
  %110 = vmatpush.msra.mxu0 0.0
  %111 = vmatpush.msra.mxu0 0.0
  %112 = vmatpush.msra.mxu0 0.0
  %113 = vmatpush.msra.mxu0 0.0
  %114 = vmatpush.msra.mxu0 0.0
  %115 = vmatpush.msra.mxu0 0.0
  %116 = vmatpush.msra.mxu0 0.0
  %117 = vmatpush.msra.mxu0 %v102
  %118 = vmatpush.msra.mxu0 %v92
  %119 = vmatpush.msra.mxu0 %v91
  %120 = vmatmul.f32.gmra.mxu0 %v96
  %v121 = vpop.f32.mrf.mxu0
  %v122 = vadd.f32 0.0, %v121
  %123 = vmatmul.f32.gmra.mxu0 %v98
  %v124 = vpop.f32.mrf.mxu0
  %v125 = vadd.f32 0.0, %v124
  %126 = vdwg.mxu0
  %v128 = vsel %vm94, %v82, 0
  %v131 = vsel %vm94, %v85, 0
  %v134 = vsel %vm100, %v89, 0
  %136 = vmatpush.msra.mxu0 0.0
  %137 = vmatpush.msra.mxu0 0.0
  %138 = vmatpush.msra.mxu0 0.0
  %139 = vmatpush.msra.mxu0 0.0
  %140 = vmatpush.msra.mxu0 0.0
  %141 = vmatpush.msra.mxu0 0.0
  %142 = vmatpush.msra.mxu0 0.0
  %143 = vmatpush.msra.mxu0 0.0
  %144 = vmatpush.msra.mxu0 0.0
  %145 = vmatpush.msra.mxu0 0.0
  %146 = vmatpush.msra.mxu0 0.0
  %147 = vmatpush.msra.mxu0 0.0
  %148 = vmatpush.msra.mxu0 0.0
  %149 = vmatpush.msra.mxu0 %v134
  %150 = vmatpush.msra.mxu0 %v88
  %151 = vmatpush.msra.mxu0 %v87
  %152 = vmatmul.f32.gmra.mxu0 %v128
  %v153 = vpop.f32.mrf.mxu0
  %v154 = vadd.f32 %v122, %v153
  %155 = vmatmul.f32.gmra.mxu0 %v131
  %v156 = vpop.f32.mrf.mxu0
  %v157 = vadd.f32 %v125, %v156
  %158 = vdwg.mxu0
  %v160 = vsel %vm53, %v49, 0
  %v163 = vsel %vm53, %v50, 0
  %165 = vmatpush.msra.mxu0 0.0
  %166 = vmatpush.msra.mxu0 0.0
  %167 = vmatpush.msra.mxu0 0.0
  %168 = vmatpush.msra.mxu0 0.0
  %169 = vmatpush.msra.mxu0 0.0
  %170 = vmatpush.msra.mxu0 0.0
  %171 = vmatpush.msra.mxu0 0.0
  %172 = vmatpush.msra.mxu0 0.0
  %173 = vmatpush.msra.mxu0 0.0
  %174 = vmatpush.msra.mxu0 0.0
  %175 = vmatpush.msra.mxu0 0.0
  %176 = vmatpush.msra.mxu0 0.0
  %177 = vmatpush.msra.mxu0 0.0
  %178 = vmatpush.msra.mxu0 0.0
  %179 = vmatpush.msra.mxu0 %v62
  %180 = vmatpush.msra.mxu0 %v51
  %181 = vmatmul.f32.gmra.mxu0 %v160
  %v182 = vpop.f32.mrf.mxu0
  %v183 = vadd.f32 0.0, %v182
  %184 = vmatmul.f32.gmra.mxu0 %v163
  %v185 = vpop.f32.mrf.mxu0
  %v186 = vadd.f32 0.0, %v185
  %187 = vdwg.mxu0
  %s188 = scalar_lea.vmem %s3, 48
  %v189 = vld [vmem:[%s188] sm:$0xff]
  %v190 = vld [vmem:[%s188 + $0x8] sm:$0xff]
  %v191 = vld [vmem:[%s188 + $0x10] sm:$0xf]
  %v193 = vsel %vm94, %v183, 0
  %v196 = vsel %vm94, %v186, 0
  %v199 = vsel %vm100, %v191, 0
  %201 = vmatpush.msra.mxu0 0.0
  %202 = vmatpush.msra.mxu0 0.0
  %203 = vmatpush.msra.mxu0 0.0
  %204 = vmatpush.msra.mxu0 0.0
  %205 = vmatpush.msra.mxu0 0.0
  %206 = vmatpush.msra.mxu0 0.0
  %207 = vmatpush.msra.mxu0 0.0
  %208 = vmatpush.msra.mxu0 0.0
  %209 = vmatpush.msra.mxu0 0.0
  %210 = vmatpush.msra.mxu0 0.0
  %211 = vmatpush.msra.mxu0 0.0
  %212 = vmatpush.msra.mxu0 0.0
  %213 = vmatpush.msra.mxu0 0.0
  %214 = vmatpush.msra.mxu0 %v199
  %215 = vmatpush.msra.mxu0 %v190
  %216 = vmatpush.msra.mxu0 %v189
  %217 = vmatmul.f32.gmra.mxu0 %v193
  %v218 = vpop.f32.mrf.mxu0
  %v219 = vadd.f32 0.0, %v218
  %220 = vmatmul.f32.gmra.mxu0 %v196
  %v221 = vpop.f32.mrf.mxu0
  %v222 = vadd.f32 0.0, %v221
  %223 = vdwg.mxu0
  %v224 = vadd.f32 %v154, %v219
  %v225 = vadd.f32 %v157, %v222
  %v226 = vld [vmem:[%s4] sm:$0x1]
  %v228 = vperm.slane %v226, 0
  %v230 = vadd.f32 %v224, %v228
  %v231 = vadd.f32 %v225, %v228
  %v232 = vmax.f32 %v230, 0.0
  %v233 = vmax.f32 %v231, 0.0
  %v235 = vsel %vm60, %v233, 0
  %237 = vmatpush.msra.mxu0 0.0
  %238 = vmatpush.msra.mxu0 0.0
  %239 = vmatpush.msra.mxu0 0.0
  %240 = vmatpush.msra.mxu0 0.0
  %241 = vmatpush.msra.mxu0 0.0
  %242 = vmatpush.msra.mxu0 0.0
  %243 = vmatpush.msra.mxu0 0.0
  %244 = vmatpush.msra.mxu0 0.0
  %245 = vmatpush.msra.mxu0 0.0
  %246 = vmatpush.msra.mxu0 0.0
  %247 = vmatpush.msra.mxu0 0.0
  %248 = vmatpush.msra.mxu0 0.0
  %249 = vmatpush.msra.mxu0 0.0
  %250 = vmatpush.msra.mxu0 0.0
  %251 = vmatpush.msra.mxu0 %v235
  %252 = vmatpush.msra.mxu0 %v232
  %253 = vmatmul.f32.gmra.mxu0 %v55
  %v254 = vpop.f32.mrf.mxu0
  %v255 = vadd.f32 0.0, %v254
  %256 = vmatmul.f32.gmra.mxu0 %v58
  %v257 = vpop.f32.mrf.mxu0
  %v258 = vadd.f32 0.0, %v257
  %259 = vdwg.mxu0
  %v260 = vld [vmem:[%s5] sm:$0xff]
  %v261 = vld [vmem:[%s5 + $0x8] sm:$0xff]
  %s262 = scalar_lea.vmem %s5, 16
  %v263 = vld [vmem:[%s262] sm:$0xff]
  %v264 = vld [vmem:[%s262 + $0x8] sm:$0xff]
  %vm265 = vcmask 130048
  %v267 = vsel %vm265, %v232, 0
  %v269 = vsel %vm265, %v233, 0
  %271 = vmatpush.msra.mxu0 0.0
  %272 = vmatpush.msra.mxu0 0.0
  %273 = vmatpush.msra.mxu0 0.0
  %274 = vmatpush.msra.mxu0 0.0
  %275 = vmatpush.msra.mxu0 0.0
  %276 = vmatpush.msra.mxu0 0.0
  %277 = vmatpush.msra.mxu0 0.0
  %278 = vmatpush.msra.mxu0 0.0
  %279 = vmatpush.msra.mxu0 0.0
  %280 = vmatpush.msra.mxu0 0.0
  %281 = vmatpush.msra.mxu0 0.0
  %282 = vmatpush.msra.mxu0 0.0
  %283 = vmatpush.msra.mxu0 0.0
  %284 = vmatpush.msra.mxu0 0.0
  %285 = vmatpush.msra.mxu0 %v264
  %286 = vmatpush.msra.mxu0 %v263
  %287 = vmatmul.f32.gmra.mxu0 %v267
  %v288 = vpop.f32.mrf.mxu0
  %v289 = vadd.f32 0.0, %v288
  %290 = vmatmul.f32.gmra.mxu0 %v269
  %v291 = vpop.f32.mrf.mxu0
  %v292 = vadd.f32 0.0, %v291
  %293 = vdwg.mxu0
  %v295 = vsel %vm265, %v255, 0
  %v298 = vsel %vm265, %v258, 0
  %300 = vmatpush.msra.mxu0 0.0
  %301 = vmatpush.msra.mxu0 0.0
  %302 = vmatpush.msra.mxu0 0.0
  %303 = vmatpush.msra.mxu0 0.0
  %304 = vmatpush.msra.mxu0 0.0
  %305 = vmatpush.msra.mxu0 0.0
  %306 = vmatpush.msra.mxu0 0.0
  %307 = vmatpush.msra.mxu0 0.0
  %308 = vmatpush.msra.mxu0 0.0
  %309 = vmatpush.msra.mxu0 0.0
  %310 = vmatpush.msra.mxu0 0.0
  %311 = vmatpush.msra.mxu0 0.0
  %312 = vmatpush.msra.mxu0 0.0
  %313 = vmatpush.msra.mxu0 0.0
  %314 = vmatpush.msra.mxu0 %v261
  %315 = vmatpush.msra.mxu0 %v260
  %316 = vmatmul.f32.gmra.mxu0 %v295
  %v317 = vpop.f32.mrf.mxu0
  %v318 = vadd.f32 %v289, %v317
  %319 = vmatmul.f32.gmra.mxu0 %v298
  %v320 = vpop.f32.mrf.mxu0
  %v321 = vadd.f32 %v292, %v320
  %322 = vdwg.mxu0
  %323 = vmatpush.msra.mxu0 0.0
  %324 = vmatpush.msra.mxu0 0.0
  %325 = vmatpush.msra.mxu0 0.0
  %326 = vmatpush.msra.mxu0 0.0
  %327 = vmatpush.msra.mxu0 0.0
  %328 = vmatpush.msra.mxu0 0.0
  %329 = vmatpush.msra.mxu0 0.0
  %330 = vmatpush.msra.mxu0 0.0
  %331 = vmatpush.msra.mxu0 0.0
  %332 = vmatpush.msra.mxu0 0.0
  %333 = vmatpush.msra.mxu0 0.0
  %334 = vmatpush.msra.mxu0 0.0
  %335 = vmatpush.msra.mxu0 0.0
  %336 = vmatpush.msra.mxu0 0.0
  %337 = vmatpush.msra.mxu0 %v235
  %338 = vmatpush.msra.mxu0 %v232
  %339 = vmatmul.f32.gmra.mxu0 %v160
  %v340 = vpop.f32.mrf.mxu0
  %v341 = vadd.f32 0.0, %v340
  %342 = vmatmul.f32.gmra.mxu0 %v163
  %v343 = vpop.f32.mrf.mxu0
  %v344 = vadd.f32 0.0, %v343
  %345 = vdwg.mxu0
  %s346 = scalar_lea.vmem %s5, 32
  %v347 = vld [vmem:[%s346] sm:$0xff]
  %v348 = vld [vmem:[%s346 + $0x8] sm:$0xff]
  %v350 = vsel %vm265, %v341, 0
  %v353 = vsel %vm265, %v344, 0
  %355 = vmatpush.msra.mxu0 0.0
  %356 = vmatpush.msra.mxu0 0.0
  %357 = vmatpush.msra.mxu0 0.0
  %358 = vmatpush.msra.mxu0 0.0
  %359 = vmatpush.msra.mxu0 0.0
  %360 = vmatpush.msra.mxu0 0.0
  %361 = vmatpush.msra.mxu0 0.0
  %362 = vmatpush.msra.mxu0 0.0
  %363 = vmatpush.msra.mxu0 0.0
  %364 = vmatpush.msra.mxu0 0.0
  %365 = vmatpush.msra.mxu0 0.0
  %366 = vmatpush.msra.mxu0 0.0
  %367 = vmatpush.msra.mxu0 0.0
  %368 = vmatpush.msra.mxu0 0.0
  %369 = vmatpush.msra.mxu0 %v348
  %370 = vmatpush.msra.mxu0 %v347
  %371 = vmatmul.f32.gmra.mxu0 %v350
  %v372 = vpop.f32.mrf.mxu0
  %v373 = vadd.f32 0.0, %v372
  %374 = vmatmul.f32.gmra.mxu0 %v353
  %v375 = vpop.f32.mrf.mxu0
  %v376 = vadd.f32 0.0, %v375
  %377 = vdwg.mxu0
  %v378 = vadd.f32 %v318, %v373
  %v379 = vadd.f32 %v321, %v376
  %v380 = vld [vmem:[%s6] sm:$0x1]
  %v382 = vperm.slane %v380, 0
  %v384 = vadd.f32 %v378, %v382
  %v385 = vadd.f32 %v379, %v382
  %v386 = vmax.f32 %v384, 0.0
  %v387 = vmax.f32 %v385, 0.0
  %v389 = vsel %vm60, %v387, 0
  %391 = vmatpush.msra.mxu0 0.0
  %392 = vmatpush.msra.mxu0 0.0
  %393 = vmatpush.msra.mxu0 0.0
  %394 = vmatpush.msra.mxu0 0.0
  %395 = vmatpush.msra.mxu0 0.0
  %396 = vmatpush.msra.mxu0 0.0
  %397 = vmatpush.msra.mxu0 0.0
  %398 = vmatpush.msra.mxu0 0.0
  %399 = vmatpush.msra.mxu0 0.0
  %400 = vmatpush.msra.mxu0 0.0
  %401 = vmatpush.msra.mxu0 0.0
  %402 = vmatpush.msra.mxu0 0.0
  %403 = vmatpush.msra.mxu0 0.0
  %404 = vmatpush.msra.mxu0 0.0
  %405 = vmatpush.msra.mxu0 %v389
  %406 = vmatpush.msra.mxu0 %v386
  %407 = vmatmul.f32.gmra.mxu0 %v55
  %v408 = vpop.f32.mrf.mxu0
  %v409 = vadd.f32 0.0, %v408
  %410 = vmatmul.f32.gmra.mxu0 %v58
  %v411 = vpop.f32.mrf.mxu0
  %v412 = vadd.f32 0.0, %v411
  %413 = vdwg.mxu0
  %v414 = vld [vmem:[%s7] sm:$0xff]
  %v415 = vld [vmem:[%s7 + $0x8] sm:$0xff]
  %v416 = vld [vmem:[%s7 + $0x10] sm:$0xff]
  %v417 = vld [vmem:[%s7 + $0x18] sm:$0xff]
  %s418 = scalar_lea.vmem %s7, 32
  %v419 = vld [vmem:[%s418] sm:$0xff]
  %v420 = vld [vmem:[%s418 + $0x8] sm:$0xff]
  %v421 = vld [vmem:[%s418 + $0x10] sm:$0xff]
  %v422 = vld [vmem:[%s418 + $0x18] sm:$0xff]
  %vm423 = vcmask 261120
  %v425 = vsel %vm423, %v386, 0
  %v427 = vsel %vm423, %v387, 0
  %429 = vmatpush.msra.mxu0 0.0
  %430 = vmatpush.msra.mxu0 0.0
  %431 = vmatpush.msra.mxu0 0.0
  %432 = vmatpush.msra.mxu0 0.0
  %433 = vmatpush.msra.mxu0 0.0
  %434 = vmatpush.msra.mxu0 0.0
  %435 = vmatpush.msra.mxu0 0.0
  %436 = vmatpush.msra.mxu0 0.0
  %437 = vmatpush.msra.mxu0 0.0
  %438 = vmatpush.msra.mxu0 0.0
  %439 = vmatpush.msra.mxu0 0.0
  %440 = vmatpush.msra.mxu0 0.0
  %441 = vmatpush.msra.mxu0 %v422
  %442 = vmatpush.msra.mxu0 %v421
  %443 = vmatpush.msra.mxu0 %v420
  %444 = vmatpush.msra.mxu0 %v419
  %445 = vmatmul.f32.gmra.mxu0 %v425
  %v446 = vpop.f32.mrf.mxu0
  %v447 = vadd.f32 0.0, %v446
  %448 = vmatmul.f32.gmra.mxu0 %v427
  %v449 = vpop.f32.mrf.mxu0
  %v450 = vadd.f32 0.0, %v449
  %451 = vdwg.mxu0
  %v453 = vsel %vm423, %v409, 0
  %v456 = vsel %vm423, %v412, 0
  %458 = vmatpush.msra.mxu0 0.0
  %459 = vmatpush.msra.mxu0 0.0
  %460 = vmatpush.msra.mxu0 0.0
  %461 = vmatpush.msra.mxu0 0.0
  %462 = vmatpush.msra.mxu0 0.0
  %463 = vmatpush.msra.mxu0 0.0
  %464 = vmatpush.msra.mxu0 0.0
  %465 = vmatpush.msra.mxu0 0.0
  %466 = vmatpush.msra.mxu0 0.0
  %467 = vmatpush.msra.mxu0 0.0
  %468 = vmatpush.msra.mxu0 0.0
  %469 = vmatpush.msra.mxu0 0.0
  %470 = vmatpush.msra.mxu0 %v417
  %471 = vmatpush.msra.mxu0 %v416
  %472 = vmatpush.msra.mxu0 %v415
  %473 = vmatpush.msra.mxu0 %v414
  %474 = vmatmul.f32.gmra.mxu0 %v453
  %v475 = vpop.f32.mrf.mxu0
  %v476 = vadd.f32 %v447, %v475
  %477 = vmatmul.f32.gmra.mxu0 %v456
  %v478 = vpop.f32.mrf.mxu0
  %v479 = vadd.f32 %v450, %v478
  %480 = vdwg.mxu0
  %481 = vmatpush.msra.mxu0 0.0
  %482 = vmatpush.msra.mxu0 0.0
  %483 = vmatpush.msra.mxu0 0.0
  %484 = vmatpush.msra.mxu0 0.0
  %485 = vmatpush.msra.mxu0 0.0
  %486 = vmatpush.msra.mxu0 0.0
  %487 = vmatpush.msra.mxu0 0.0
  %488 = vmatpush.msra.mxu0 0.0
  %489 = vmatpush.msra.mxu0 0.0
  %490 = vmatpush.msra.mxu0 0.0
  %491 = vmatpush.msra.mxu0 0.0
  %492 = vmatpush.msra.mxu0 0.0
  %493 = vmatpush.msra.mxu0 0.0
  %494 = vmatpush.msra.mxu0 0.0
  %495 = vmatpush.msra.mxu0 %v389
  %496 = vmatpush.msra.mxu0 %v386
  %497 = vmatmul.f32.gmra.mxu0 %v160
  %v498 = vpop.f32.mrf.mxu0
  %v499 = vadd.f32 0.0, %v498
  %500 = vmatmul.f32.gmra.mxu0 %v163
  %v501 = vpop.f32.mrf.mxu0
  %v502 = vadd.f32 0.0, %v501
  %503 = vdwg.mxu0
  %s504 = scalar_lea.vmem %s7, 64
  %v505 = vld [vmem:[%s504] sm:$0xff]
  %v506 = vld [vmem:[%s504 + $0x8] sm:$0xff]
  %v507 = vld [vmem:[%s504 + $0x10] sm:$0xff]
  %v508 = vld [vmem:[%s504 + $0x18] sm:$0xff]
  %v510 = vsel %vm423, %v499, 0
  %v513 = vsel %vm423, %v502, 0
  %515 = vmatpush.msra.mxu0 0.0
  %516 = vmatpush.msra.mxu0 0.0
  %517 = vmatpush.msra.mxu0 0.0
  %518 = vmatpush.msra.mxu0 0.0
  %519 = vmatpush.msra.mxu0 0.0
  %520 = vmatpush.msra.mxu0 0.0
  %521 = vmatpush.msra.mxu0 0.0
  %522 = vmatpush.msra.mxu0 0.0
  %523 = vmatpush.msra.mxu0 0.0
  %524 = vmatpush.msra.mxu0 0.0
  %525 = vmatpush.msra.mxu0 0.0
  %526 = vmatpush.msra.mxu0 0.0
  %527 = vmatpush.msra.mxu0 %v508
  %528 = vmatpush.msra.mxu0 %v507
  %529 = vmatpush.msra.mxu0 %v506
  %530 = vmatpush.msra.mxu0 %v505
  %531 = vmatmul.f32.gmra.mxu0 %v510
  %v532 = vpop.f32.mrf.mxu0
  %v533 = vadd.f32 0.0, %v532
  %534 = vmatmul.f32.gmra.mxu0 %v513
  %v535 = vpop.f32.mrf.mxu0
  %v536 = vadd.f32 0.0, %v535
  %537 = vdwg.mxu0
  %v538 = vadd.f32 %v476, %v533
  %v539 = vadd.f32 %v479, %v536
  %v540 = vld [vmem:[%s8] sm:$0x1]
  %v542 = vperm.slane %v540, 0
  %v544 = vadd.f32 %v538, %v542
  %v545 = vadd.f32 %v539, %v542
  %v546 = vmax.f32 %v544, 0.0
  %v547 = vmax.f32 %v545, 0.0
  %v548 = vld [vmem:[%s9] sm:$0xff]
  %v549 = vld [vmem:[%s9 + $0x8] sm:$0xff]
  %v550 = vld [vmem:[%s9 + $0x10] sm:$0xff]
  %v551 = vld [vmem:[%s9 + $0x18] sm:$0xff]
  %v552 = vld [vmem:[%s9 + $0x20] sm:$0xff]
  %v553 = vld [vmem:[%s9 + $0x28] sm:$0xff]
  %v554 = vld [vmem:[%s9 + $0x30] sm:$0xff]
  %v555 = vld [vmem:[%s9 + $0x38] sm:$0xff]
  %v556 = vld [vmem:[%s9 + $0x40] sm:$0xff]
  %v557 = vld [vmem:[%s9 + $0x48] sm:$0xff]
  %v558 = vld [vmem:[%s9 + $0x50] sm:$0xff]
  %v559 = vld [vmem:[%s9 + $0x58] sm:$0xff]
  %v560 = vld [vmem:[%s9 + $0x60] sm:$0xff]
  %v561 = vld [vmem:[%s9 + $0x68] sm:$0xff]
  %v562 = vld [vmem:[%s9 + $0x70] sm:$0xff]
  %v563 = vld [vmem:[%s9 + $0x78] sm:$0xff]
  %vm564 = vcmask 523264
  %v566 = vsel %vm564, %v546, 0
  %v569 = vsel %vm564, %v547, 0
  %571 = vmatpush.msra.mxu0 0.0
  %572 = vmatpush.msra.mxu0 0.0
  %573 = vmatpush.msra.mxu0 0.0
  %574 = vmatpush.msra.mxu0 0.0
  %575 = vmatpush.msra.mxu0 0.0
  %576 = vmatpush.msra.mxu0 0.0
  %577 = vmatpush.msra.mxu0 0.0
  %578 = vmatpush.msra.mxu0 0.0
  %579 = vmatpush.msra.mxu0 %v562
  %580 = vmatpush.msra.mxu0 %v560
  %581 = vmatpush.msra.mxu0 %v558
  %582 = vmatpush.msra.mxu0 %v556
  %583 = vmatpush.msra.mxu0 %v554
  %584 = vmatpush.msra.mxu0 %v552
  %585 = vmatpush.msra.mxu0 %v550
  %586 = vmatpush.msra.mxu0 %v548
  %587 = vmatmul.f32.gmra.mxu0 %v566
  %v588 = vpop.f32.mrf.mxu0
  %v589 = vadd.f32 0.0, %v588
  %590 = vmatmul.f32.gmra.mxu0 %v569
  %v591 = vpop.f32.mrf.mxu0
  %v592 = vadd.f32 0.0, %v591
  %593 = vdwg.mxu0
  %594 = vmatpush.msra.mxu0 0.0
  %595 = vmatpush.msra.mxu0 0.0
  %596 = vmatpush.msra.mxu0 0.0
  %597 = vmatpush.msra.mxu0 0.0
  %598 = vmatpush.msra.mxu0 0.0
  %599 = vmatpush.msra.mxu0 0.0
  %600 = vmatpush.msra.mxu0 0.0
  %601 = vmatpush.msra.mxu0 0.0
  %602 = vmatpush.msra.mxu0 %v563
  %603 = vmatpush.msra.mxu0 %v561
  %604 = vmatpush.msra.mxu0 %v559
  %605 = vmatpush.msra.mxu0 %v557
  %606 = vmatpush.msra.mxu0 %v555
  %607 = vmatpush.msra.mxu0 %v553
  %608 = vmatpush.msra.mxu0 %v551
  %609 = vmatpush.msra.mxu0 %v549
  %610 = vmatmul.f32.gmra.mxu0 %v566
  %v611 = vpop.f32.mrf.mxu0
  %v612 = vadd.f32 0.0, %v611
  %613 = vmatmul.f32.gmra.mxu0 %v569
  %v614 = vpop.f32.mrf.mxu0
  %v615 = vadd.f32 0.0, %v614
  %616 = vdwg.mxu0
  %v617 = vld [vmem:[%s10] sm:$0xff]
  %v618 = vld [vmem:[%s10 + $0x8] sm:$0xff]
  %v619 = vld [vmem:[%s10 + $0x10] sm:$0x3]
  %v620 = vld [vmem:[%s10 + $0x18] sm:$0x3]
  %v621 = vmul.f32 %v589, %v617
  %v622 = vmul.f32 %v612, %v618
  %v623 = vmul.f32 %v592, %v619
  %v624 = vmul.f32 %v615, %v620
  %v625 = vld [vmem:[%s11] sm:$0x3]
  %v627 = vsel %vm53, %v625, 0
  %v630 = vsel %vm60, %v623, 0
  %v633 = vsel %vm60, %v624, 0
  %635 = vmatpush.msra.mxu0 0.0
  %636 = vmatpush.msra.mxu0 0.0
  %637 = vmatpush.msra.mxu0 0.0
  %638 = vmatpush.msra.mxu0 0.0
  %639 = vmatpush.msra.mxu0 0.0
  %640 = vmatpush.msra.mxu0 0.0
  %641 = vmatpush.msra.mxu0 0.0
  %642 = vmatpush.msra.mxu0 0.0
  %643 = vmatpush.msra.mxu0 0.0
  %644 = vmatpush.msra.mxu0 0.0
  %645 = vmatpush.msra.mxu0 0.0
  %646 = vmatpush.msra.mxu0 0.0
  %647 = vmatpush.msra.mxu0 0.0
  %648 = vmatpush.msra.mxu0 0.0
  %649 = vmatpush.msra.mxu0 %v630
  %650 = vmatpush.msra.mxu0 %v621
  %651 = vmatmul.f32.gmra.mxu0 %v627
  %v652 = vpop.f32.mrf.mxu0
  %v653 = vadd.f32 0.0, %v652
  %654 = vdwg.mxu0
  %655 = vmatpush.msra.mxu0 0.0
  %656 = vmatpush.msra.mxu0 0.0
  %657 = vmatpush.msra.mxu0 0.0
  %658 = vmatpush.msra.mxu0 0.0
  %659 = vmatpush.msra.mxu0 0.0
  %660 = vmatpush.msra.mxu0 0.0
  %661 = vmatpush.msra.mxu0 0.0
  %662 = vmatpush.msra.mxu0 0.0
  %663 = vmatpush.msra.mxu0 0.0
  %664 = vmatpush.msra.mxu0 0.0
  %665 = vmatpush.msra.mxu0 0.0
  %666 = vmatpush.msra.mxu0 0.0
  %667 = vmatpush.msra.mxu0 0.0
  %668 = vmatpush.msra.mxu0 0.0
  %669 = vmatpush.msra.mxu0 %v633
  %670 = vmatpush.msra.mxu0 %v622
  %671 = vmatmul.f32.gmra.mxu0 %v627
  %v672 = vpop.f32.mrf.mxu0
  %v673 = vadd.f32 0.0, %v672
  %674 = vdwg.mxu0
  %v675 = vld [vmem:[%s12] sm:$0xff]
  %v676 = vld [vmem:[%s12 + $0x8] sm:$0xff]
  %v677 = vld [vmem:[%s12 + $0x10] sm:$0xff]
  %v678 = vld [vmem:[%s12 + $0x18] sm:$0xff]
  %v679 = vld [vmem:[%s12 + $0x20] sm:$0xff]
  %v680 = vld [vmem:[%s12 + $0x28] sm:$0xff]
  %v681 = vld [vmem:[%s12 + $0x30] sm:$0xff]
  %v682 = vld [vmem:[%s12 + $0x38] sm:$0xff]
  %v683 = vld [vmem:[%s12 + $0x40] sm:$0xff]
  %v684 = vld [vmem:[%s12 + $0x48] sm:$0xff]
  %v685 = vld [vmem:[%s12 + $0x50] sm:$0xff]
  %v686 = vld [vmem:[%s12 + $0x58] sm:$0xff]
  %v687 = vld [vmem:[%s12 + $0x60] sm:$0xff]
  %v688 = vld [vmem:[%s12 + $0x68] sm:$0xff]
  %v689 = vld [vmem:[%s12 + $0x70] sm:$0xff]
  %v690 = vld [vmem:[%s12 + $0x78] sm:$0xff]
  %v691 = vld [vmem:[%s12 + $0x80] sm:$0xff]
  %v692 = vld [vmem:[%s12 + $0x88] sm:$0xff]
  %v693 = vld [vmem:[%s12 + $0x90] sm:$0xff]
  %v694 = vld [vmem:[%s12 + $0x98] sm:$0xff]
  %v695 = vld [vmem:[%s13] sm:$0x1]
  %v697 = vperm.slane %v695, 0
  %v700 = vsel %vm423, %v673, 0
  %702 = vmatpush.msra.mxu0 %v690
  %703 = vmatpush.msra.mxu0 %v689
  %704 = vmatpush.msra.mxu0 %v688
  %705 = vmatpush.msra.mxu0 %v687
  %706 = vmatpush.msra.mxu0 %v686
  %707 = vmatpush.msra.mxu0 %v685
  %708 = vmatpush.msra.mxu0 %v684
  %709 = vmatpush.msra.mxu0 %v683
  %710 = vmatpush.msra.mxu0 %v682
  %711 = vmatpush.msra.mxu0 %v681
  %712 = vmatpush.msra.mxu0 %v680
  %713 = vmatpush.msra.mxu0 %v679
  %714 = vmatpush.msra.mxu0 %v678
  %715 = vmatpush.msra.mxu0 %v677
  %716 = vmatpush.msra.mxu0 %v676
  %717 = vmatpush.msra.mxu0 %v675
  %718 = vmatmul.f32.gmra.mxu0 %v653
  %v719 = vpop.f32.mrf.mxu0
  %v720 = vadd.f32 %v697, %v719
  %721 = vdwg.mxu0
  %722 = vmatpush.msra.mxu0 0.0
  %723 = vmatpush.msra.mxu0 0.0
  %724 = vmatpush.msra.mxu0 0.0
  %725 = vmatpush.msra.mxu0 0.0
  %726 = vmatpush.msra.mxu0 0.0
  %727 = vmatpush.msra.mxu0 0.0
  %728 = vmatpush.msra.mxu0 0.0
  %729 = vmatpush.msra.mxu0 0.0
  %730 = vmatpush.msra.mxu0 0.0
  %731 = vmatpush.msra.mxu0 0.0
  %732 = vmatpush.msra.mxu0 0.0
  %733 = vmatpush.msra.mxu0 0.0
  %734 = vmatpush.msra.mxu0 %v694
  %735 = vmatpush.msra.mxu0 %v693
  %736 = vmatpush.msra.mxu0 %v692
  %737 = vmatpush.msra.mxu0 %v691
  %738 = vmatmul.f32.gmra.mxu0 %v700
  %v739 = vpop.f32.mrf.mxu0
  %v740 = vadd.f32 %v720, %v739
  %741 = vdwg.mxu0
  %vm742 = vcmask 254976
  %743 = vst.msk [vmem:[%s14] sm:$0x3] %vm742, %v740
  // Predicated region
  $region58: #{lstm6_forward.2} parent=0 // pred_check
    _
  $region59: #{lstm6_forward.2} parent=0 // pred_check_branch
    %745 = sbr.rel (0) target = $region61
  $region60: #{lstm6_forward.2} parent=0 // pred_region
    _
  $region61: #{lstm6_forward.2} parent=0 // pred_fallthru
    _
  // Predicated region
  $region62: #{lstm6_forward.2} parent=0 // pred_check
    _
  $region63: #{lstm6_forward.2} parent=0 // pred_check_branch
    %747 = sbr.rel (0) target = $region65
  $region64: #{lstm6_forward.2} parent=0 // pred_region
    _
  $region65: #{lstm6_forward.2} parent=0 // pred_fallthru
    _

// kernel: lstm6_forward.3
$region0: #{lstm6_forward.3}
  #allocation0 [shape = 'u32[]', space=smem, size = 0x4, offset = 0x4, fixed_abs, tag = 'smem constant byte address 0x4 - core index']
  #allocation1 [shape = 'u32[72,128]{1,0:T(1,128)}', space=vmem, size = 0x9000, scoped, tag = 'internal scratch']
  #allocation2 [shape = 'f32[16,64]{1,0:T(8,128)}', space=vmem, size = 0x2000, scoped, tag = 'scratch operand']
  %s0 = inlined_call_operand.vmem [shape: f32[2,32], index: 0, kind: input, shape index: {}]
  %s1 = inlined_call_operand.vmem [shape: f32[16,4], index: 1, kind: input, shape index: {}]
  %s2 = inlined_call_operand.vmem [shape: f32[16,16], index: 2, kind: input, shape index: {}]
  %s3 = inlined_call_operand.vmem [shape: f32[16,16], index: 3, kind: input, shape index: {}]
  %s4 = inlined_call_operand.vmem [shape: f32[4,120], index: 4, kind: input, shape index: {}]
  %s5 = inlined_call_operand.vmem [shape: f32[1,120], index: 5, kind: input, shape index: {}]
  %s6 = inlined_call_operand.vmem [shape: f32[3,4,120], index: 6, kind: input, shape index: {}]
  %s7 = inlined_call_operand.vmem [shape: f32[1,120], index: 7, kind: input, shape index: {}]
  %s8 = inlined_call_operand.vmem [shape: f32[120,64], index: 8, kind: input, shape index: {}]
  %s9 = inlined_call_operand.vmem [shape: f32[120,64], index: 9, kind: input, shape index: {}]
  %s10 = inlined_call_operand.vmem [shape: f32[1,64], index: 10, kind: input, shape index: {}]
  %s11 = inlined_call_operand.vmem [shape: f32[3,120,64], index: 11, kind: input, shape index: {}]
  %s12 = inlined_call_operand.vmem [shape: f32[3,120,64], index: 12, kind: input, shape index: {}]
  %s13 = inlined_call_operand.vmem [shape: f32[1,64], index: 13, kind: input, shape index: {}]
  %s14 = inlined_call_operand.vmem [shape: f32[64,256], index: 14, kind: input, shape index: {}]
  %s15 = inlined_call_operand.vmem [shape: f32[64,256], index: 15, kind: input, shape index: {}]
  %s16 = inlined_call_operand.vmem [shape: f32[1,256], index: 16, kind: input, shape index: {}]
  %s17 = inlined_call_operand.vmem [shape: f32[64,256], index: 17, kind: input, shape index: {}]
  %s18 = inlined_call_operand.vmem [shape: f32[64,256], index: 18, kind: input, shape index: {}]
  %s19 = inlined_call_operand.vmem [shape: f32[16,256], index: 19, kind: input, shape index: {}]
  %s20 = inlined_call_operand.vmem [shape: f32[2,16], index: 20, kind: input, shape index: {}]
  %s21 = inlined_call_operand.vmem [shape: f32[256,32], index: 21, kind: input, shape index: {}]
  %s22 = inlined_call_operand.vmem [shape: f32[1,32], index: 22, kind: input, shape index: {}]
  %s23 = inlined_call_operand.vmem [shape: f32[32,32], index: 23, kind: input, shape index: {}]
  %s24 = inlined_call_operand.vmem [shape: f32[32,32], index: 24, kind: input, shape index: {}]
  %s25 = inlined_call_operand.vmem [shape: f32[1,32], index: 25, kind: input, shape index: {}]
  %s26 = inlined_call_operand.vmem [shape: f32[32,2], index: 26, kind: input, shape index: {}]
  %s27 = inlined_call_operand.vmem [shape: f32[1,2], index: 27, kind: input, shape index: {}]
  %s28 = inlined_call_operand.hbm [shape: f32[2,2], index: 28, kind: output, shape index: {}]
  %s29 = sld [smem:[#allocation0]]
  $region122: #{lstm6_forward.3} parent=0
    _
  %s31 = ssub.s32 1, %s29
  %s32 = scalar_select 0, %s31, %s29
  $region1: #{lstm6_forward.3} parent=0
    #allocation3 [shape = 'u8[1024]{0}', space=vmem, size = 0x400, scoped, tag = 'output window, operand 0, single buffered']
    #allocation4 [shape = 's32[1]{0}', space=sflag, size = 0x4, scoped, tag = 'scoped memory for lstm6_forward.3']
    %33 = vsyncpa [#allocation4], 0
    // Predicated region
    $region2: #{lstm6_forward.3} parent=1 // pred_check
      _
    $region3: #{lstm6_forward.3} parent=1 // pred_check_branch
      %35 = sbr.rel (0) target = $region5
    $region4: #{lstm6_forward.3} parent=1 // pred_region
      _
    $region5: #{lstm6_forward.3} parent=1 // pred_fallthru
      _
    // Predicated region
    $region6: #{lstm6_forward.3} parent=1 // pred_check
      _
    $region7: #{lstm6_forward.3} parent=1 // pred_check_branch
      %37 = sbr.rel (0) target = $region9
    $region8: #{lstm6_forward.3} parent=1 // pred_region
      _
    $region9: #{lstm6_forward.3} parent=1 // pred_fallthru
      _
    // Predicated region
    $region10: #{lstm6_forward.3} parent=1 // pred_check
      _
    $region11: #{lstm6_forward.3} parent=1 // pred_check_branch
      %39 = sbr.rel (0) target = $region13
    $region12: #{lstm6_forward.3} parent=1 // pred_region
      _
    $region13: #{lstm6_forward.3} parent=1 // pred_fallthru
      _
    // Predicated region
    $region14: #{lstm6_forward.3} parent=1 // pred_check
      _
    $region15: #{lstm6_forward.3} parent=1 // pred_check_branch
      %41 = sbr.rel (0) target = $region17
    $region16: #{lstm6_forward.3} parent=1 // pred_region
      _
    $region17: #{lstm6_forward.3} parent=1 // pred_fallthru
      _
    // Predicated region
    $region18: #{lstm6_forward.3} parent=1 // pred_check
      _
    $region19: #{lstm6_forward.3} parent=1 // pred_check_branch
      %43 = sbr.rel (0) target = $region21
    $region20: #{lstm6_forward.3} parent=1 // pred_region
      _
    $region21: #{lstm6_forward.3} parent=1 // pred_fallthru
      _
    // Predicated region
    $region22: #{lstm6_forward.3} parent=1 // pred_check
      _
    $region23: #{lstm6_forward.3} parent=1 // pred_check_branch
      %45 = sbr.rel (0) target = $region25
    $region24: #{lstm6_forward.3} parent=1 // pred_region
      _
    $region25: #{lstm6_forward.3} parent=1 // pred_fallthru
      _
    // Predicated region
    $region26: #{lstm6_forward.3} parent=1 // pred_check
      _
    $region27: #{lstm6_forward.3} parent=1 // pred_check_branch
      %47 = sbr.rel (0) target = $region29
    $region28: #{lstm6_forward.3} parent=1 // pred_region
      _
    $region29: #{lstm6_forward.3} parent=1 // pred_fallthru
      _
    // Predicated region
    $region30: #{lstm6_forward.3} parent=1 // pred_check
      _
    $region31: #{lstm6_forward.3} parent=1 // pred_check_branch
      %49 = sbr.rel (0) target = $region33
    $region32: #{lstm6_forward.3} parent=1 // pred_region
      _
    $region33: #{lstm6_forward.3} parent=1 // pred_fallthru
      _
    // Predicated region
    $region34: #{lstm6_forward.3} parent=1 // pred_check
      _
    $region35: #{lstm6_forward.3} parent=1 // pred_check_branch
      %51 = sbr.rel (0) target = $region37
    $region36: #{lstm6_forward.3} parent=1 // pred_region
      _
    $region37: #{lstm6_forward.3} parent=1 // pred_fallthru
      _
    // Predicated region
    $region38: #{lstm6_forward.3} parent=1 // pred_check
      _
    $region39: #{lstm6_forward.3} parent=1 // pred_check_branch
      %53 = sbr.rel (0) target = $region41
    $region40: #{lstm6_forward.3} parent=1 // pred_region
      _
    $region41: #{lstm6_forward.3} parent=1 // pred_fallthru
      _
    // Predicated region
    $region42: #{lstm6_forward.3} parent=1 // pred_check
      _
    $region43: #{lstm6_forward.3} parent=1 // pred_check_branch
      %55 = sbr.rel (0) target = $region45
    $region44: #{lstm6_forward.3} parent=1 // pred_region
      _
    $region45: #{lstm6_forward.3} parent=1 // pred_fallthru
      _
    // Predicated region
    $region46: #{lstm6_forward.3} parent=1 // pred_check
      _
    $region47: #{lstm6_forward.3} parent=1 // pred_check_branch
      %57 = sbr.rel (0) target = $region49
    $region48: #{lstm6_forward.3} parent=1 // pred_region
      _
    $region49: #{lstm6_forward.3} parent=1 // pred_fallthru
      _
    // Predicated region
    $region50: #{lstm6_forward.3} parent=1 // pred_check
      _
    $region51: #{lstm6_forward.3} parent=1 // pred_check_branch
      %59 = sbr.rel (0) target = $region53
    $region52: #{lstm6_forward.3} parent=1 // pred_region
      _
    $region53: #{lstm6_forward.3} parent=1 // pred_fallthru
      _
    // Predicated region
    $region54: #{lstm6_forward.3} parent=1 // pred_check
      _
    $region55: #{lstm6_forward.3} parent=1 // pred_check_branch
      %61 = sbr.rel (0) target = $region57
    $region56: #{lstm6_forward.3} parent=1 // pred_region
      _
    $region57: #{lstm6_forward.3} parent=1 // pred_fallthru
      _
    // Predicated region
    $region58: #{lstm6_forward.3} parent=1 // pred_check
      _
    $region59: #{lstm6_forward.3} parent=1 // pred_check_branch
      %63 = sbr.rel (0) target = $region61
    $region60: #{lstm6_forward.3} parent=1 // pred_region
      _
    $region61: #{lstm6_forward.3} parent=1 // pred_fallthru
      _
    // Predicated region
    $region62: #{lstm6_forward.3} parent=1 // pred_check
      _
    $region63: #{lstm6_forward.3} parent=1 // pred_check_branch
      %65 = sbr.rel (0) target = $region65
    $region64: #{lstm6_forward.3} parent=1 // pred_region
      _
    $region65: #{lstm6_forward.3} parent=1 // pred_fallthru
      _
    // Predicated region
    $region66: #{lstm6_forward.3} parent=1 // pred_check
      _
    $region67: #{lstm6_forward.3} parent=1 // pred_check_branch
      %67 = sbr.rel (0) target = $region69
    $region68: #{lstm6_forward.3} parent=1 // pred_region
      _
    $region69: #{lstm6_forward.3} parent=1 // pred_fallthru
      _
    // Predicated region
    $region70: #{lstm6_forward.3} parent=1 // pred_check
      _
    $region71: #{lstm6_forward.3} parent=1 // pred_check_branch
      %69 = sbr.rel (0) target = $region73
    $region72: #{lstm6_forward.3} parent=1 // pred_region
      _
    $region73: #{lstm6_forward.3} parent=1 // pred_fallthru
      _
    // Predicated region
    $region74: #{lstm6_forward.3} parent=1 // pred_check
      _
    $region75: #{lstm6_forward.3} parent=1 // pred_check_branch
      %71 = sbr.rel (0) target = $region77
    $region76: #{lstm6_forward.3} parent=1 // pred_region
      _
    $region77: #{lstm6_forward.3} parent=1 // pred_fallthru
      _
    // Predicated region
    $region78: #{lstm6_forward.3} parent=1 // pred_check
      _
    $region79: #{lstm6_forward.3} parent=1 // pred_check_branch
      %73 = sbr.rel (0) target = $region81
    $region80: #{lstm6_forward.3} parent=1 // pred_region
      _
    $region81: #{lstm6_forward.3} parent=1 // pred_fallthru
      _
    // Predicated region
    $region82: #{lstm6_forward.3} parent=1 // pred_check
      _
    $region83: #{lstm6_forward.3} parent=1 // pred_check_branch
      %75 = sbr.rel (0) target = $region85
    $region84: #{lstm6_forward.3} parent=1 // pred_region
      _
    $region85: #{lstm6_forward.3} parent=1 // pred_fallthru
      _
    // Predicated region
    $region86: #{lstm6_forward.3} parent=1 // pred_check
      _
    $region87: #{lstm6_forward.3} parent=1 // pred_check_branch
      %77 = sbr.rel (0) target = $region89
    $region88: #{lstm6_forward.3} parent=1 // pred_region
      _
    $region89: #{lstm6_forward.3} parent=1 // pred_fallthru
      _
    // Predicated region
    $region90: #{lstm6_forward.3} parent=1 // pred_check
      _
    $region91: #{lstm6_forward.3} parent=1 // pred_check_branch
      %79 = sbr.rel (0) target = $region93
    $region92: #{lstm6_forward.3} parent=1 // pred_region
      _
    $region93: #{lstm6_forward.3} parent=1 // pred_fallthru
      _
    // Predicated region
    $region94: #{lstm6_forward.3} parent=1 // pred_check
      _
    $region95: #{lstm6_forward.3} parent=1 // pred_check_branch
      %81 = sbr.rel (0) target = $region97
    $region96: #{lstm6_forward.3} parent=1 // pred_region
      _
    $region97: #{lstm6_forward.3} parent=1 // pred_fallthru
      _
    // Predicated region
    $region98: #{lstm6_forward.3} parent=1 // pred_check
      _
    $region99: #{lstm6_forward.3} parent=1 // pred_check_branch
      %83 = sbr.rel (0) target = $region101
    $region100: #{lstm6_forward.3} parent=1 // pred_region
      _
    $region101: #{lstm6_forward.3} parent=1 // pred_fallthru
      _
    // Predicated region
    $region102: #{lstm6_forward.3} parent=1 // pred_check
      _
    $region103: #{lstm6_forward.3} parent=1 // pred_check_branch
      %85 = sbr.rel (0) target = $region105
    $region104: #{lstm6_forward.3} parent=1 // pred_region
      _
    $region105: #{lstm6_forward.3} parent=1 // pred_fallthru
      _
    // Predicated region
    $region106: #{lstm6_forward.3} parent=1 // pred_check
      _
    $region107: #{lstm6_forward.3} parent=1 // pred_check_branch
      %87 = sbr.rel (0) target = $region109
    $region108: #{lstm6_forward.3} parent=1 // pred_region
      _
    $region109: #{lstm6_forward.3} parent=1 // pred_fallthru
      _
    // Predicated region
    $region110: #{lstm6_forward.3} parent=1 // pred_check
      _
    $region111: #{lstm6_forward.3} parent=1 // pred_check_branch
      %89 = sbr.rel (0) target = $region113
    $region112: #{lstm6_forward.3} parent=1 // pred_region
      _
    $region113: #{lstm6_forward.3} parent=1 // pred_fallthru
      _
    %v90 = vld [vmem:[%s2] sm:$0xff]
    %v91 = vld [vmem:[%s2 + $0x8] sm:$0xff]
    %v92 = vld [vmem:[%s3] sm:$0xff]
    %v93 = vld [vmem:[%s3 + $0x8] sm:$0xff]
    %v94 = vld [vmem:[%s1] sm:$0xff]
    %v95 = vld [vmem:[%s1 + $0x8] sm:$0xff]
    %vm96 = vcmask 130048
    %v98 = vsel %vm96, %v90, 0
    %v101 = vsel %vm96, %v91, 0
    %103 = vmatpush.msra.mxu0 0.0
    %104 = vmatpush.msra.mxu0 0.0
    %105 = vmatpush.msra.mxu0 0.0
    %106 = vmatpush.msra.mxu0 0.0
    %107 = vmatpush.msra.mxu0 0.0
    %108 = vmatpush.msra.mxu0 0.0
    %109 = vmatpush.msra.mxu0 0.0
    %110 = vmatpush.msra.mxu0 0.0
    %111 = vmatpush.msra.mxu0 0.0
    %112 = vmatpush.msra.mxu0 0.0
    %113 = vmatpush.msra.mxu0 0.0
    %114 = vmatpush.msra.mxu0 0.0
    %115 = vmatpush.msra.mxu0 0.0
    %116 = vmatpush.msra.mxu0 0.0
    %117 = vmatpush.msra.mxu0 %v95
    %118 = vmatpush.msra.mxu0 %v94
    %119 = vmatmul.f32.gmra.mxu0 %v98
    %v120 = vpop.f32.mrf.mxu0
    %v121 = vadd.f32 0.0, %v120
    %122 = vmatmul.f32.gmra.mxu0 %v101
    %v123 = vpop.f32.mrf.mxu0
    %v124 = vadd.f32 0.0, %v123
    %125 = vdwg.mxu0
    %v127 = vsel %vm96, %v92, 0
    %v130 = vsel %vm96, %v93, 0
    %132 = vmatpush.msra.mxu0 0.0
    %133 = vmatpush.msra.mxu0 0.0
    %134 = vmatpush.msra.mxu0 0.0
    %135 = vmatpush.msra.mxu0 0.0
    %136 = vmatpush.msra.mxu0 0.0
    %137 = vmatpush.msra.mxu0 0.0
    %138 = vmatpush.msra.mxu0 0.0
    %139 = vmatpush.msra.mxu0 0.0
    %140 = vmatpush.msra.mxu0 0.0
    %141 = vmatpush.msra.mxu0 0.0
    %142 = vmatpush.msra.mxu0 0.0
    %143 = vmatpush.msra.mxu0 0.0
    %144 = vmatpush.msra.mxu0 0.0
    %145 = vmatpush.msra.mxu0 0.0
    %146 = vmatpush.msra.mxu0 %v95
    %147 = vmatpush.msra.mxu0 %v94
    %148 = vmatmul.f32.gmra.mxu0 %v127
    %v149 = vpop.f32.mrf.mxu0
    %v150 = vadd.f32 0.0, %v149
    %151 = vmatmul.f32.gmra.mxu0 %v130
    %v152 = vpop.f32.mrf.mxu0
    %v153 = vadd.f32 0.0, %v152
    %154 = vdwg.mxu0
    %v155 = vld [vmem:[%s4] sm:$0xf]
    %v156 = vld [vmem:[%s5] sm:$0x1]
    %v158 = vperm.slane %v156, 0
    %vm160 = vcmask 31744
    %v162 = vsel %vm160, %v94, 0
    %v165 = vsel %vm160, %v95, 0
    %vm167 = vcmask 1043456
    %v169 = vsel %vm167, %v155, 0
    %171 = vmatpush.msra.mxu0 0.0
    %172 = vmatpush.msra.mxu0 0.0
    %173 = vmatpush.msra.mxu0 0.0
    %174 = vmatpush.msra.mxu0 0.0
    %175 = vmatpush.msra.mxu0 0.0
    %176 = vmatpush.msra.mxu0 0.0
    %177 = vmatpush.msra.mxu0 0.0
    %178 = vmatpush.msra.mxu0 0.0
    %179 = vmatpush.msra.mxu0 0.0
    %180 = vmatpush.msra.mxu0 0.0
    %181 = vmatpush.msra.mxu0 0.0
    %182 = vmatpush.msra.mxu0 0.0
    %183 = vmatpush.msra.mxu0 0.0
    %184 = vmatpush.msra.mxu0 0.0
    %185 = vmatpush.msra.mxu0 0.0
    %186 = vmatpush.msra.mxu0 %v169
    %187 = vmatmul.f32.gmra.mxu0 %v162
    %v188 = vpop.f32.mrf.mxu0
    %v189 = vadd.f32 %v158, %v188
    %190 = vmatmul.f32.gmra.mxu0 %v165
    %v191 = vpop.f32.mrf.mxu0
    %v192 = vadd.f32 %v158, %v191
    %193 = vdwg.mxu0
    %v194 = vld [vmem:[%s6] sm:$0xf]
    %s195 = scalar_lea.vmem %s6, 4
    %v196 = vld [vmem:[%s195] sm:$0xf]
    %v198 = vsel %vm167, %v196, 0
    %200 = vmatpush.msra.mxu0 0.0
    %201 = vmatpush.msra.mxu0 0.0
    %202 = vmatpush.msra.mxu0 0.0
    %203 = vmatpush.msra.mxu0 0.0
    %204 = vmatpush.msra.mxu0 0.0
    %205 = vmatpush.msra.mxu0 0.0
    %206 = vmatpush.msra.mxu0 0.0
    %207 = vmatpush.msra.mxu0 0.0
    %208 = vmatpush.msra.mxu0 0.0
    %209 = vmatpush.msra.mxu0 0.0
    %210 = vmatpush.msra.mxu0 0.0
    %211 = vmatpush.msra.mxu0 0.0
    %212 = vmatpush.msra.mxu0 0.0
    %213 = vmatpush.msra.mxu0 0.0
    %214 = vmatpush.msra.mxu0 0.0
    %215 = vmatpush.msra.mxu0 %v198
    %216 = vmatmul.f32.gmra.mxu0 %v162
    %v217 = vpop.f32.mrf.mxu0
    %v218 = vadd.f32 0.0, %v217
    %219 = vmatmul.f32.gmra.mxu0 %v165
    %v220 = vpop.f32.mrf.mxu0
    %v221 = vadd.f32 0.0, %v220
    %222 = vdwg.mxu0
    %v224 = vsel %vm160, %v121, 0
    %v227 = vsel %vm160, %v124, 0
    %v230 = vsel %vm167, %v194, 0
    %232 = vmatpush.msra.mxu0 0.0
    %233 = vmatpush.msra.mxu0 0.0
    %234 = vmatpush.msra.mxu0 0.0
    %235 = vmatpush.msra.mxu0 0.0
    %236 = vmatpush.msra.mxu0 0.0
    %237 = vmatpush.msra.mxu0 0.0
    %238 = vmatpush.msra.mxu0 0.0
    %239 = vmatpush.msra.mxu0 0.0
    %240 = vmatpush.msra.mxu0 0.0
    %241 = vmatpush.msra.mxu0 0.0
    %242 = vmatpush.msra.mxu0 0.0
    %243 = vmatpush.msra.mxu0 0.0
    %244 = vmatpush.msra.mxu0 0.0
    %245 = vmatpush.msra.mxu0 0.0
    %246 = vmatpush.msra.mxu0 0.0
    %247 = vmatpush.msra.mxu0 %v230
    %248 = vmatmul.f32.gmra.mxu0 %v224
    %v249 = vpop.f32.mrf.mxu0
    %v250 = vadd.f32 %v218, %v249
    %251 = vmatmul.f32.gmra.mxu0 %v227
    %v252 = vpop.f32.mrf.mxu0
    %v253 = vadd.f32 %v221, %v252
    %254 = vdwg.mxu0
    %s255 = scalar_lea.vmem %s6, 8
    %v256 = vld [vmem:[%s255] sm:$0xf]
    %v258 = vsel %vm160, %v150, 0
    %v261 = vsel %vm160, %v153, 0
    %v264 = vsel %vm167, %v256, 0
    %266 = vmatpush.msra.mxu0 0.0
    %267 = vmatpush.msra.mxu0 0.0
    %268 = vmatpush.msra.mxu0 0.0
    %269 = vmatpush.msra.mxu0 0.0
    %270 = vmatpush.msra.mxu0 0.0
    %271 = vmatpush.msra.mxu0 0.0
    %272 = vmatpush.msra.mxu0 0.0
    %273 = vmatpush.msra.mxu0 0.0
    %274 = vmatpush.msra.mxu0 0.0
    %275 = vmatpush.msra.mxu0 0.0
    %276 = vmatpush.msra.mxu0 0.0
    %277 = vmatpush.msra.mxu0 0.0
    %278 = vmatpush.msra.mxu0 0.0
    %279 = vmatpush.msra.mxu0 0.0
    %280 = vmatpush.msra.mxu0 0.0
    %281 = vmatpush.msra.mxu0 %v264
    %282 = vmatmul.f32.gmra.mxu0 %v258
    %v283 = vpop.f32.mrf.mxu0
    %v284 = vadd.f32 0.0, %v283
    %285 = vmatmul.f32.gmra.mxu0 %v261
    %v286 = vpop.f32.mrf.mxu0
    %v287 = vadd.f32 0.0, %v286
    %288 = vdwg.mxu0
    %v289 = vadd.f32 %v250, %v284
    %v290 = vadd.f32 %v253, %v287
    %v291 = vld [vmem:[%s7] sm:$0x1]
    %v293 = vperm.slane %v291, 0
    %v295 = vadd.f32 %v289, %v293
    %v296 = vadd.f32 %v290, %v293
    %297 = vmatpush.msra.mxu0 0.0
    %298 = vmatpush.msra.mxu0 0.0
    %299 = vmatpush.msra.mxu0 0.0
    %300 = vmatpush.msra.mxu0 0.0
    %301 = vmatpush.msra.mxu0 0.0
    %302 = vmatpush.msra.mxu0 0.0
    %303 = vmatpush.msra.mxu0 0.0
    %304 = vmatpush.msra.mxu0 0.0
    %305 = vmatpush.msra.mxu0 0.0
    %306 = vmatpush.msra.mxu0 0.0
    %307 = vmatpush.msra.mxu0 0.0
    %308 = vmatpush.msra.mxu0 0.0
    %309 = vmatpush.msra.mxu0 0.0
    %310 = vmatpush.msra.mxu0 0.0
    %311 = vmatpush.msra.mxu0 %v192
    %312 = vmatpush.msra.mxu0 %v189
    %313 = vmatmul.f32.gmra.mxu0 %v98
    %v314 = vpop.f32.mrf.mxu0
    %v315 = vadd.f32 0.0, %v314
    %316 = vmatmul.f32.gmra.mxu0 %v101
    %v317 = vpop.f32.mrf.mxu0
    %v318 = vadd.f32 0.0, %v317
    %319 = vdwg.mxu0
    %320 = vmatpush.msra.mxu0 0.0
    %321 = vmatpush.msra.mxu0 0.0
    %322 = vmatpush.msra.mxu0 0.0
    %323 = vmatpush.msra.mxu0 0.0
    %324 = vmatpush.msra.mxu0 0.0
    %325 = vmatpush.msra.mxu0 0.0
    %326 = vmatpush.msra.mxu0 0.0
    %327 = vmatpush.msra.mxu0 0.0
    %328 = vmatpush.msra.mxu0 0.0
    %329 = vmatpush.msra.mxu0 0.0
    %330 = vmatpush.msra.mxu0 0.0
    %331 = vmatpush.msra.mxu0 0.0
    %332 = vmatpush.msra.mxu0 0.0
    %333 = vmatpush.msra.mxu0 0.0
    %334 = vmatpush.msra.mxu0 %v192
    %335 = vmatpush.msra.mxu0 %v189
    %336 = vmatmul.f32.gmra.mxu0 %v127
    %v337 = vpop.f32.mrf.mxu0
    %v338 = vadd.f32 0.0, %v337
    %339 = vmatmul.f32.gmra.mxu0 %v130
    %v340 = vpop.f32.mrf.mxu0
    %v341 = vadd.f32 0.0, %v340
    %342 = vdwg.mxu0
    %343 = vmatpush.msra.mxu0 0.0
    %344 = vmatpush.msra.mxu0 0.0
    %345 = vmatpush.msra.mxu0 0.0
    %346 = vmatpush.msra.mxu0 0.0
    %347 = vmatpush.msra.mxu0 0.0
    %348 = vmatpush.msra.mxu0 0.0
    %349 = vmatpush.msra.mxu0 0.0
    %350 = vmatpush.msra.mxu0 0.0
    %351 = vmatpush.msra.mxu0 0.0
    %352 = vmatpush.msra.mxu0 0.0
    %353 = vmatpush.msra.mxu0 0.0
    %354 = vmatpush.msra.mxu0 0.0
    %355 = vmatpush.msra.mxu0 0.0
    %356 = vmatpush.msra.mxu0 0.0
    %357 = vmatpush.msra.mxu0 %v296
    %358 = vmatpush.msra.mxu0 %v295
    %359 = vmatmul.f32.gmra.mxu0 %v98
    %v360 = vpop.f32.mrf.mxu0
    %v361 = vadd.f32 0.0, %v360
    %362 = vmatmul.f32.gmra.mxu0 %v101
    %v363 = vpop.f32.mrf.mxu0
    %v364 = vadd.f32 0.0, %v363
    %365 = vdwg.mxu0
    %366 = vmatpush.msra.mxu0 0.0
    %367 = vmatpush.msra.mxu0 0.0
    %368 = vmatpush.msra.mxu0 0.0
    %369 = vmatpush.msra.mxu0 0.0
    %370 = vmatpush.msra.mxu0 0.0
    %371 = vmatpush.msra.mxu0 0.0
    %372 = vmatpush.msra.mxu0 0.0
    %373 = vmatpush.msra.mxu0 0.0
    %374 = vmatpush.msra.mxu0 0.0
    %375 = vmatpush.msra.mxu0 0.0
    %376 = vmatpush.msra.mxu0 0.0
    %377 = vmatpush.msra.mxu0 0.0
    %378 = vmatpush.msra.mxu0 0.0
    %379 = vmatpush.msra.mxu0 0.0
    %380 = vmatpush.msra.mxu0 %v296
    %381 = vmatpush.msra.mxu0 %v295
    %382 = vmatmul.f32.gmra.mxu0 %v127
    %v383 = vpop.f32.mrf.mxu0
    %v384 = vadd.f32 0.0, %v383
    %385 = vmatmul.f32.gmra.mxu0 %v130
    %v386 = vpop.f32.mrf.mxu0
    %v387 = vadd.f32 0.0, %v386
    %388 = vdwg.mxu0
    %v389 = vld [vmem:[%s8] sm:$0xff]
    %v390 = vld [vmem:[%s8 + $0x8] sm:$0xff]
    %v391 = vld [vmem:[%s8 + $0x10] sm:$0xff]
    %v392 = vld [vmem:[%s8 + $0x18] sm:$0xff]
    %v393 = vld [vmem:[%s8 + $0x20] sm:$0xff]
    %v394 = vld [vmem:[%s8 + $0x28] sm:$0xff]
    %v395 = vld [vmem:[%s8 + $0x30] sm:$0xff]
    %v396 = vld [vmem:[%s8 + $0x38] sm:$0xff]
    %v397 = vld [vmem:[%s8 + $0x40] sm:$0xff]
    %v398 = vld [vmem:[%s8 + $0x48] sm:$0xff]
    %v399 = vld [vmem:[%s8 + $0x50] sm:$0xff]
    %v400 = vld [vmem:[%s8 + $0x58] sm:$0xff]
    %v401 = vld [vmem:[%s8 + $0x60] sm:$0xff]
    %v402 = vld [vmem:[%s8 + $0x68] sm:$0xff]
    %v403 = vld [vmem:[%s8 + $0x70] sm:$0xff]
    %v404 = vld [vmem:[%s9] sm:$0xff]
    %v405 = vld [vmem:[%s9 + $0x8] sm:$0xff]
    %v406 = vld [vmem:[%s9 + $0x10] sm:$0xff]
    %v407 = vld [vmem:[%s9 + $0x18] sm:$0xff]
    %v408 = vld [vmem:[%s9 + $0x20] sm:$0xff]
    %v409 = vld [vmem:[%s9 + $0x28] sm:$0xff]
    %v410 = vld [vmem:[%s9 + $0x30] sm:$0xff]
    %v411 = vld [vmem:[%s9 + $0x38] sm:$0xff]
    %v412 = vld [vmem:[%s9 + $0x40] sm:$0xff]
    %v413 = vld [vmem:[%s9 + $0x48] sm:$0xff]
    %v414 = vld [vmem:[%s9 + $0x50] sm:$0xff]
    %v415 = vld [vmem:[%s9 + $0x58] sm:$0xff]
    %v416 = vld [vmem:[%s9 + $0x60] sm:$0xff]
    %v417 = vld [vmem:[%s9 + $0x68] sm:$0xff]
    %v418 = vld [vmem:[%s9 + $0x70] sm:$0xff]
    %vm419 = vcmask 982016
    %v421 = vsel %vm419, %v295, 0
    %v424 = vsel %vm419, %v296, 0
    %426 = vmatpush.msra.mxu0 0.0
    %427 = vmatpush.msra.mxu0 %v418
    %428 = vmatpush.msra.mxu0 %v417
    %429 = vmatpush.msra.mxu0 %v416
    %430 = vmatpush.msra.mxu0 %v415
    %431 = vmatpush.msra.mxu0 %v414
    %432 = vmatpush.msra.mxu0 %v413
    %433 = vmatpush.msra.mxu0 %v412
    %434 = vmatpush.msra.mxu0 %v411
    %435 = vmatpush.msra.mxu0 %v410
    %436 = vmatpush.msra.mxu0 %v409
    %437 = vmatpush.msra.mxu0 %v408
    %438 = vmatpush.msra.mxu0 %v407
    %439 = vmatpush.msra.mxu0 %v406
    %440 = vmatpush.msra.mxu0 %v405
    %441 = vmatpush.msra.mxu0 %v404
    %442 = vmatmul.f32.gmra.mxu0 %v421
    %v443 = vpop.f32.mrf.mxu0
    %v444 = vadd.f32 0.0, %v443
    %445 = vmatmul.f32.gmra.mxu0 %v424
    %v446 = vpop.f32.mrf.mxu0
    %v447 = vadd.f32 0.0, %v446
    %448 = vdwg.mxu0
    %v450 = vsel %vm419, %v189, 0
    %v453 = vsel %vm419, %v192, 0
    %455 = vmatpush.msra.mxu0 0.0
    %456 = vmatpush.msra.mxu0 %v403
    %457 = vmatpush.msra.mxu0 %v402
    %458 = vmatpush.msra.mxu0 %v401
    %459 = vmatpush.msra.mxu0 %v400
    %460 = vmatpush.msra.mxu0 %v399
    %461 = vmatpush.msra.mxu0 %v398
    %462 = vmatpush.msra.mxu0 %v397
    %463 = vmatpush.msra.mxu0 %v396
    %464 = vmatpush.msra.mxu0 %v395
    %465 = vmatpush.msra.mxu0 %v394
    %466 = vmatpush.msra.mxu0 %v393
    %467 = vmatpush.msra.mxu0 %v392
    %468 = vmatpush.msra.mxu0 %v391
    %469 = vmatpush.msra.mxu0 %v390
    %470 = vmatpush.msra.mxu0 %v389
    %471 = vmatmul.f32.gmra.mxu0 %v450
    %v472 = vpop.f32.mrf.mxu0
    %v473 = vadd.f32 %v444, %v472
    %474 = vmatmul.f32.gmra.mxu0 %v453
    %v475 = vpop.f32.mrf.mxu0
    %v476 = vadd.f32 %v447, %v475
    %477 = vdwg.mxu0
    %v478 = vld [vmem:[%s10] sm:$0x1]
    %v480 = vperm.slane %v478, 0
    %v482 = vadd.f32 %v473, %v480
    %v483 = vadd.f32 %v476, %v480
    %v484 = vld [vmem:[%s11] sm:$0xff]
    %v485 = vld [vmem:[%s11 + $0x8] sm:$0xff]
    %v486 = vld [vmem:[%s11 + $0x10] sm:$0xff]
    %v487 = vld [vmem:[%s11 + $0x18] sm:$0xff]
    %v488 = vld [vmem:[%s11 + $0x20] sm:$0xff]
    %v489 = vld [vmem:[%s11 + $0x28] sm:$0xff]
    %v490 = vld [vmem:[%s11 + $0x30] sm:$0xff]
    %v491 = vld [vmem:[%s11 + $0x38] sm:$0xff]
    %v492 = vld [vmem:[%s11 + $0x40] sm:$0xff]
    %v493 = vld [vmem:[%s11 + $0x48] sm:$0xff]
    %v494 = vld [vmem:[%s11 + $0x50] sm:$0xff]
    %v495 = vld [vmem:[%s11 + $0x58] sm:$0xff]
    %v496 = vld [vmem:[%s11 + $0x60] sm:$0xff]
    %v497 = vld [vmem:[%s11 + $0x68] sm:$0xff]
    %v498 = vld [vmem:[%s11 + $0x70] sm:$0xff]
    %v499 = vld [vmem:[%s12] sm:$0xff]
    %v500 = vld [vmem:[%s12 + $0x8] sm:$0xff]
    %v501 = vld [vmem:[%s12 + $0x10] sm:$0xff]
    %v502 = vld [vmem:[%s12 + $0x18] sm:$0xff]
    %v503 = vld [vmem:[%s12 + $0x20] sm:$0xff]
    %v504 = vld [vmem:[%s12 + $0x28] sm:$0xff]
    %v505 = vld [vmem:[%s12 + $0x30] sm:$0xff]
    %v506 = vld [vmem:[%s12 + $0x38] sm:$0xff]
    %v507 = vld [vmem:[%s12 + $0x40] sm:$0xff]
    %v508 = vld [vmem:[%s12 + $0x48] sm:$0xff]
    %v509 = vld [vmem:[%s12 + $0x50] sm:$0xff]
    %v510 = vld [vmem:[%s12 + $0x58] sm:$0xff]
    %v511 = vld [vmem:[%s12 + $0x60] sm:$0xff]
    %v512 = vld [vmem:[%s12 + $0x68] sm:$0xff]
    %v513 = vld [vmem:[%s12 + $0x70] sm:$0xff]
    %v515 = vsel %vm419, %v361, 0
    %v518 = vsel %vm419, %v364, 0
    %520 = vmatpush.msra.mxu0 0.0
    %521 = vmatpush.msra.mxu0 %v513
    %522 = vmatpush.msra.mxu0 %v512
    %523 = vmatpush.msra.mxu0 %v511
    %524 = vmatpush.msra.mxu0 %v510
    %525 = vmatpush.msra.mxu0 %v509
    %526 = vmatpush.msra.mxu0 %v508
    %527 = vmatpush.msra.mxu0 %v507
    %528 = vmatpush.msra.mxu0 %v506
    %529 = vmatpush.msra.mxu0 %v505
    %530 = vmatpush.msra.mxu0 %v504
    %531 = vmatpush.msra.mxu0 %v503
    %532 = vmatpush.msra.mxu0 %v502
    %533 = vmatpush.msra.mxu0 %v501
    %534 = vmatpush.msra.mxu0 %v500
    %535 = vmatpush.msra.mxu0 %v499
    %536 = vmatmul.f32.gmra.mxu0 %v515
    %v537 = vpop.f32.mrf.mxu0
    %v538 = vadd.f32 0.0, %v537
    %539 = vmatmul.f32.gmra.mxu0 %v518
    %v540 = vpop.f32.mrf.mxu0
    %v541 = vadd.f32 0.0, %v540
    %542 = vdwg.mxu0
    %v544 = vsel %vm419, %v315, 0
    %v547 = vsel %vm419, %v318, 0
    %549 = vmatpush.msra.mxu0 0.0
    %550 = vmatpush.msra.mxu0 %v498
    %551 = vmatpush.msra.mxu0 %v497
    %552 = vmatpush.msra.mxu0 %v496
    %553 = vmatpush.msra.mxu0 %v495
    %554 = vmatpush.msra.mxu0 %v494
    %555 = vmatpush.msra.mxu0 %v493
    %556 = vmatpush.msra.mxu0 %v492
    %557 = vmatpush.msra.mxu0 %v491
    %558 = vmatpush.msra.mxu0 %v490
    %559 = vmatpush.msra.mxu0 %v489
    %560 = vmatpush.msra.mxu0 %v488
    %561 = vmatpush.msra.mxu0 %v487
    %562 = vmatpush.msra.mxu0 %v486
    %563 = vmatpush.msra.mxu0 %v485
    %564 = vmatpush.msra.mxu0 %v484
    %565 = vmatmul.f32.gmra.mxu0 %v544
    %v566 = vpop.f32.mrf.mxu0
    %v567 = vadd.f32 %v538, %v566
    %568 = vmatmul.f32.gmra.mxu0 %v547
    %v569 = vpop.f32.mrf.mxu0
    %v570 = vadd.f32 %v541, %v569
    %571 = vdwg.mxu0
    %s572 = scalar_lea.vmem %s11, 120
    %v573 = vld [vmem:[%s572] sm:$0xff]
    %v574 = vld [vmem:[%s572 + $0x8] sm:$0xff]
    %v575 = vld [vmem:[%s572 + $0x10] sm:$0xff]
    %v576 = vld [vmem:[%s572 + $0x18] sm:$0xff]
    %v577 = vld [vmem:[%s572 + $0x20] sm:$0xff]
    %v578 = vld [vmem:[%s572 + $0x28] sm:$0xff]
    %v579 = vld [vmem:[%s572 + $0x30] sm:$0xff]
    %v580 = vld [vmem:[%s572 + $0x38] sm:$0xff]
    %v581 = vld [vmem:[%s572 + $0x40] sm:$0xff]
    %v582 = vld [vmem:[%s572 + $0x48] sm:$0xff]
    %v583 = vld [vmem:[%s572 + $0x50] sm:$0xff]
    %v584 = vld [vmem:[%s572 + $0x58] sm:$0xff]
    %v585 = vld [vmem:[%s572 + $0x60] sm:$0xff]
    %v586 = vld [vmem:[%s572 + $0x68] sm:$0xff]
    %v587 = vld [vmem:[%s572 + $0x70] sm:$0xff]
    %588 = vmatpush.msra.mxu0 0.0
    %589 = vmatpush.msra.mxu0 %v587
    %590 = vmatpush.msra.mxu0 %v586
    %591 = vmatpush.msra.mxu0 %v585
    %592 = vmatpush.msra.mxu0 %v584
    %593 = vmatpush.msra.mxu0 %v583
    %594 = vmatpush.msra.mxu0 %v582
    %595 = vmatpush.msra.mxu0 %v581
    %596 = vmatpush.msra.mxu0 %v580
    %597 = vmatpush.msra.mxu0 %v579
    %598 = vmatpush.msra.mxu0 %v578
    %599 = vmatpush.msra.mxu0 %v577
    %600 = vmatpush.msra.mxu0 %v576
    %601 = vmatpush.msra.mxu0 %v575
    %602 = vmatpush.msra.mxu0 %v574
    %603 = vmatpush.msra.mxu0 %v573
    %604 = vmatmul.f32.gmra.mxu0 %v450
    %v605 = vpop.f32.mrf.mxu0
    %v606 = vadd.f32 0.0, %v605
    %607 = vmatmul.f32.gmra.mxu0 %v453
    %v608 = vpop.f32.mrf.mxu0
    %v609 = vadd.f32 0.0, %v608
    %610 = vdwg.mxu0
    %v611 = vadd.f32 %v567, %v606
    %v612 = vadd.f32 %v570, %v609
    %s613 = scalar_lea.vmem %s12, 120
    %v614 = vld [vmem:[%s613] sm:$0xff]
    %v615 = vld [vmem:[%s613 + $0x8] sm:$0xff]
    %v616 = vld [vmem:[%s613 + $0x10] sm:$0xff]
    %v617 = vld [vmem:[%s613 + $0x18] sm:$0xff]
    %v618 = vld [vmem:[%s613 + $0x20] sm:$0xff]
    %v619 = vld [vmem:[%s613 + $0x28] sm:$0xff]
    %v620 = vld [vmem:[%s613 + $0x30] sm:$0xff]
    %v621 = vld [vmem:[%s613 + $0x38] sm:$0xff]
    %v622 = vld [vmem:[%s613 + $0x40] sm:$0xff]
    %v623 = vld [vmem:[%s613 + $0x48] sm:$0xff]
    %v624 = vld [vmem:[%s613 + $0x50] sm:$0xff]
    %v625 = vld [vmem:[%s613 + $0x58] sm:$0xff]
    %v626 = vld [vmem:[%s613 + $0x60] sm:$0xff]
    %v627 = vld [vmem:[%s613 + $0x68] sm:$0xff]
    %v628 = vld [vmem:[%s613 + $0x70] sm:$0xff]
    %629 = vmatpush.msra.mxu0 0.0
    %630 = vmatpush.msra.mxu0 %v628
    %631 = vmatpush.msra.mxu0 %v627
    %632 = vmatpush.msra.mxu0 %v626
    %633 = vmatpush.msra.mxu0 %v625
    %634 = vmatpush.msra.mxu0 %v624
    %635 = vmatpush.msra.mxu0 %v623
    %636 = vmatpush.msra.mxu0 %v622
    %637 = vmatpush.msra.mxu0 %v621
    %638 = vmatpush.msra.mxu0 %v620
    %639 = vmatpush.msra.mxu0 %v619
    %640 = vmatpush.msra.mxu0 %v618
    %641 = vmatpush.msra.mxu0 %v617
    %642 = vmatpush.msra.mxu0 %v616
    %643 = vmatpush.msra.mxu0 %v615
    %644 = vmatpush.msra.mxu0 %v614
    %645 = vmatmul.f32.gmra.mxu0 %v421
    %v646 = vpop.f32.mrf.mxu0
    %v647 = vadd.f32 0.0, %v646
    %648 = vmatmul.f32.gmra.mxu0 %v424
    %v649 = vpop.f32.mrf.mxu0
    %v650 = vadd.f32 0.0, %v649
    %651 = vdwg.mxu0
    %v652 = vadd.f32 %v611, %v647
    %v653 = vadd.f32 %v612, %v650
    %s654 = scalar_lea.vmem %s11, 240
    %v655 = vld [vmem:[%s654] sm:$0xff]
    %v656 = vld [vmem:[%s654 + $0x8] sm:$0xff]
    %v657 = vld [vmem:[%s654 + $0x10] sm:$0xff]
    %v658 = vld [vmem:[%s654 + $0x18] sm:$0xff]
    %v659 = vld [vmem:[%s654 + $0x20] sm:$0xff]
    %v660 = vld [vmem:[%s654 + $0x28] sm:$0xff]
    %v661 = vld [vmem:[%s654 + $0x30] sm:$0xff]
    %v662 = vld [vmem:[%s654 + $0x38] sm:$0xff]
    %v663 = vld [vmem:[%s654 + $0x40] sm:$0xff]
    %v664 = vld [vmem:[%s654 + $0x48] sm:$0xff]
    %v665 = vld [vmem:[%s654 + $0x50] sm:$0xff]
    %v666 = vld [vmem:[%s654 + $0x58] sm:$0xff]
    %v667 = vld [vmem:[%s654 + $0x60] sm:$0xff]
    %v668 = vld [vmem:[%s654 + $0x68] sm:$0xff]
    %v669 = vld [vmem:[%s654 + $0x70] sm:$0xff]
    %v671 = vsel %vm419, %v338, 0
    %v674 = vsel %vm419, %v341, 0
    %676 = vmatpush.msra.mxu0 0.0
    %677 = vmatpush.msra.mxu0 %v669
    %678 = vmatpush.msra.mxu0 %v668
    %679 = vmatpush.msra.mxu0 %v667
    %680 = vmatpush.msra.mxu0 %v666
    %681 = vmatpush.msra.mxu0 %v665
    %682 = vmatpush.msra.mxu0 %v664
    %683 = vmatpush.msra.mxu0 %v663
    %684 = vmatpush.msra.mxu0 %v662
    %685 = vmatpush.msra.mxu0 %v661
    %686 = vmatpush.msra.mxu0 %v660
    %687 = vmatpush.msra.mxu0 %v659
    %688 = vmatpush.msra.mxu0 %v658
    %689 = vmatpush.msra.mxu0 %v657
    %690 = vmatpush.msra.mxu0 %v656
    %691 = vmatpush.msra.mxu0 %v655
    %692 = vmatmul.f32.gmra.mxu0 %v671
    %v693 = vpop.f32.mrf.mxu0
    %v694 = vadd.f32 0.0, %v693
    %695 = vmatmul.f32.gmra.mxu0 %v674
    %v696 = vpop.f32.mrf.mxu0
    %v697 = vadd.f32 0.0, %v696
    %698 = vdwg.mxu0
    %v699 = vadd.f32 %v652, %v694
    %v700 = vadd.f32 %v653, %v697
    %s701 = scalar_lea.vmem %s12, 240
    %v702 = vld [vmem:[%s701] sm:$0xff]
    %v703 = vld [vmem:[%s701 + $0x8] sm:$0xff]
    %v704 = vld [vmem:[%s701 + $0x10] sm:$0xff]
    %v705 = vld [vmem:[%s701 + $0x18] sm:$0xff]
    %v706 = vld [vmem:[%s701 + $0x20] sm:$0xff]
    %v707 = vld [vmem:[%s701 + $0x28] sm:$0xff]
    %v708 = vld [vmem:[%s701 + $0x30] sm:$0xff]
    %v709 = vld [vmem:[%s701 + $0x38] sm:$0xff]
    %v710 = vld [vmem:[%s701 + $0x40] sm:$0xff]
    %v711 = vld [vmem:[%s701 + $0x48] sm:$0xff]
    %v712 = vld [vmem:[%s701 + $0x50] sm:$0xff]
    %v713 = vld [vmem:[%s701 + $0x58] sm:$0xff]
    %v714 = vld [vmem:[%s701 + $0x60] sm:$0xff]
    %v715 = vld [vmem:[%s701 + $0x68] sm:$0xff]
    %v716 = vld [vmem:[%s701 + $0x70] sm:$0xff]
    %v718 = vsel %vm419, %v384, 0
    %v721 = vsel %vm419, %v387, 0
    %723 = vmatpush.msra.mxu0 0.0
    %724 = vmatpush.msra.mxu0 %v716
    %725 = vmatpush.msra.mxu0 %v715
    %726 = vmatpush.msra.mxu0 %v714
    %727 = vmatpush.msra.mxu0 %v713
    %728 = vmatpush.msra.mxu0 %v712
    %729 = vmatpush.msra.mxu0 %v711
    %730 = vmatpush.msra.mxu0 %v710
    %731 = vmatpush.msra.mxu0 %v709
    %732 = vmatpush.msra.mxu0 %v708
    %733 = vmatpush.msra.mxu0 %v707
    %734 = vmatpush.msra.mxu0 %v706
    %735 = vmatpush.msra.mxu0 %v705
    %736 = vmatpush.msra.mxu0 %v704
    %737 = vmatpush.msra.mxu0 %v703
    %738 = vmatpush.msra.mxu0 %v702
    %739 = vmatmul.f32.gmra.mxu0 %v718
    %v740 = vpop.f32.mrf.mxu0
    %v741 = vadd.f32 0.0, %v740
    %742 = vmatmul.f32.gmra.mxu0 %v721
    %v743 = vpop.f32.mrf.mxu0
    %v744 = vadd.f32 0.0, %v743
    %745 = vdwg.mxu0
    %v746 = vadd.f32 %v699, %v741
    %v747 = vadd.f32 %v700, %v744
    %v748 = vld [vmem:[%s13] sm:$0x1]
    %v750 = vperm.slane %v748, 0
    %v752 = vadd.f32 %v746, %v750
    %v753 = vadd.f32 %v747, %v750
    %v754 = vld [vmem:[%s14] sm:$0xff]
    %v755 = vld [vmem:[%s14 + $0x8] sm:$0xff]
    %v756 = vld [vmem:[%s14 + $0x10] sm:$0xff]
    %v757 = vld [vmem:[%s14 + $0x18] sm:$0xff]
    %v758 = vld [vmem:[%s14 + $0x20] sm:$0xff]
    %v759 = vld [vmem:[%s14 + $0x28] sm:$0xff]
    %v760 = vld [vmem:[%s14 + $0x30] sm:$0xff]
    %v761 = vld [vmem:[%s14 + $0x38] sm:$0xff]
    %v762 = vld [vmem:[%s14 + $0x40] sm:$0xff]
    %v763 = vld [vmem:[%s14 + $0x48] sm:$0xff]
    %v764 = vld [vmem:[%s14 + $0x50] sm:$0xff]
    %v765 = vld [vmem:[%s14 + $0x58] sm:$0xff]
    %v766 = vld [vmem:[%s14 + $0x60] sm:$0xff]
    %v767 = vld [vmem:[%s14 + $0x68] sm:$0xff]
    %v768 = vld [vmem:[%s14 + $0x70] sm:$0xff]
    %v769 = vld [vmem:[%s14 + $0x78] sm:$0xff]
    %v770 = vld [vmem:[%s15] sm:$0xff]
    %v771 = vld [vmem:[%s15 + $0x8] sm:$0xff]
    %v772 = vld [vmem:[%s15 + $0x10] sm:$0xff]
    %v773 = vld [vmem:[%s15 + $0x18] sm:$0xff]
    %v774 = vld [vmem:[%s15 + $0x20] sm:$0xff]
    %v775 = vld [vmem:[%s15 + $0x28] sm:$0xff]
    %v776 = vld [vmem:[%s15 + $0x30] sm:$0xff]
    %v777 = vld [vmem:[%s15 + $0x38] sm:$0xff]
    %v778 = vld [vmem:[%s15 + $0x40] sm:$0xff]
    %v779 = vld [vmem:[%s15 + $0x48] sm:$0xff]
    %v780 = vld [vmem:[%s15 + $0x50] sm:$0xff]
    %v781 = vld [vmem:[%s15 + $0x58] sm:$0xff]
    %v782 = vld [vmem:[%s15 + $0x60] sm:$0xff]
    %v783 = vld [vmem:[%s15 + $0x68] sm:$0xff]
    %v784 = vld [vmem:[%s15 + $0x70] sm:$0xff]
    %v785 = vld [vmem:[%s15 + $0x78] sm:$0xff]
    %vm786 = vcmask 523264
    %v788 = vsel %vm786, %v752, 0
    %v791 = vsel %vm786, %v753, 0
    %793 = vmatpush.msra.mxu0 0.0
    %794 = vmatpush.msra.mxu0 0.0
    %795 = vmatpush.msra.mxu0 0.0
    %796 = vmatpush.msra.mxu0 0.0
    %797 = vmatpush.msra.mxu0 0.0
    %798 = vmatpush.msra.mxu0 0.0
    %799 = vmatpush.msra.mxu0 0.0
    %800 = vmatpush.msra.mxu0 0.0
    %801 = vmatpush.msra.mxu0 %v784
    %802 = vmatpush.msra.mxu0 %v782
    %803 = vmatpush.msra.mxu0 %v780
    %804 = vmatpush.msra.mxu0 %v778
    %805 = vmatpush.msra.mxu0 %v776
    %806 = vmatpush.msra.mxu0 %v774
    %807 = vmatpush.msra.mxu0 %v772
    %808 = vmatpush.msra.mxu0 %v770
    %809 = vmatmul.f32.gmra.mxu0 %v788
    %v810 = vpop.f32.mrf.mxu0
    %v811 = vadd.f32 0.0, %v810
    %812 = vmatmul.f32.gmra.mxu0 %v791
    %v813 = vpop.f32.mrf.mxu0
    %v814 = vadd.f32 0.0, %v813
    %815 = vdwg.mxu0
    %816 = vmatpush.msra.mxu0 0.0
    %817 = vmatpush.msra.mxu0 0.0
    %818 = vmatpush.msra.mxu0 0.0
    %819 = vmatpush.msra.mxu0 0.0
    %820 = vmatpush.msra.mxu0 0.0
    %821 = vmatpush.msra.mxu0 0.0
    %822 = vmatpush.msra.mxu0 0.0
    %823 = vmatpush.msra.mxu0 0.0
    %824 = vmatpush.msra.mxu0 %v785
    %825 = vmatpush.msra.mxu0 %v783
    %826 = vmatpush.msra.mxu0 %v781
    %827 = vmatpush.msra.mxu0 %v779
    %828 = vmatpush.msra.mxu0 %v777
    %829 = vmatpush.msra.mxu0 %v775
    %830 = vmatpush.msra.mxu0 %v773
    %831 = vmatpush.msra.mxu0 %v771
    %832 = vmatmul.f32.gmra.mxu0 %v788
    %v833 = vpop.f32.mrf.mxu0
    %v834 = vadd.f32 0.0, %v833
    %835 = vmatmul.f32.gmra.mxu0 %v791
    %v836 = vpop.f32.mrf.mxu0
    %v837 = vadd.f32 0.0, %v836
    %838 = vdwg.mxu0
    %v840 = vsel %vm786, %v482, 0
    %v843 = vsel %vm786, %v483, 0
    %845 = vmatpush.msra.mxu0 0.0
    %846 = vmatpush.msra.mxu0 0.0
    %847 = vmatpush.msra.mxu0 0.0
    %848 = vmatpush.msra.mxu0 0.0
    %849 = vmatpush.msra.mxu0 0.0
    %850 = vmatpush.msra.mxu0 0.0
    %851 = vmatpush.msra.mxu0 0.0
    %852 = vmatpush.msra.mxu0 0.0
    %853 = vmatpush.msra.mxu0 %v768
    %854 = vmatpush.msra.mxu0 %v766
    %855 = vmatpush.msra.mxu0 %v764
    %856 = vmatpush.msra.mxu0 %v762
    %857 = vmatpush.msra.mxu0 %v760
    %858 = vmatpush.msra.mxu0 %v758
    %859 = vmatpush.msra.mxu0 %v756
    %860 = vmatpush.msra.mxu0 %v754
    %861 = vmatmul.f32.gmra.mxu0 %v840
    %v862 = vpop.f32.mrf.mxu0
    %v863 = vadd.f32 %v811, %v862
    %864 = vmatmul.f32.gmra.mxu0 %v843
    %v865 = vpop.f32.mrf.mxu0
    %v866 = vadd.f32 %v814, %v865
    %867 = vdwg.mxu0
    %868 = vmatpush.msra.mxu0 0.0
    %869 = vmatpush.msra.mxu0 0.0
    %870 = vmatpush.msra.mxu0 0.0
    %871 = vmatpush.msra.mxu0 0.0
    %872 = vmatpush.msra.mxu0 0.0
    %873 = vmatpush.msra.mxu0 0.0
    %874 = vmatpush.msra.mxu0 0.0
    %875 = vmatpush.msra.mxu0 0.0
    %876 = vmatpush.msra.mxu0 %v769
    %877 = vmatpush.msra.mxu0 %v767
    %878 = vmatpush.msra.mxu0 %v765
    %879 = vmatpush.msra.mxu0 %v763
    %880 = vmatpush.msra.mxu0 %v761
    %881 = vmatpush.msra.mxu0 %v759
    %882 = vmatpush.msra.mxu0 %v757
    %883 = vmatpush.msra.mxu0 %v755
    %884 = vmatmul.f32.gmra.mxu0 %v840
    %v885 = vpop.f32.mrf.mxu0
    %v886 = vadd.f32 %v834, %v885
    %887 = vmatmul.f32.gmra.mxu0 %v843
    %v888 = vpop.f32.mrf.mxu0
    %v889 = vadd.f32 %v837, %v888
    %890 = vdwg.mxu0
    %v891 = vld [vmem:[%s16] sm:$0x3]
    %v893 = vperm.slane %v891, 0
    %v894 = vperm.slane %v891, 1
    %v897 = vadd.f32 %v863, %v893
    %v898 = vadd.f32 %v886, %v894
    %v899 = vadd.f32 %v866, %v893
    %v900 = vadd.f32 %v889, %v894
    %v901 = vld [vmem:[%s17] sm:$0xff]
    %v902 = vld [vmem:[%s17 + $0x8] sm:$0xff]
    %v903 = vld [vmem:[%s17 + $0x10] sm:$0xff]
    %v904 = vld [vmem:[%s17 + $0x18] sm:$0xff]
    %v905 = vld [vmem:[%s17 + $0x20] sm:$0xff]
    %v906 = vld [vmem:[%s17 + $0x28] sm:$0xff]
    %v907 = vld [vmem:[%s17 + $0x30] sm:$0xff]
    %v908 = vld [vmem:[%s17 + $0x38] sm:$0xff]
    %v909 = vld [vmem:[%s17 + $0x40] sm:$0xff]
    %v910 = vld [vmem:[%s17 + $0x48] sm:$0xff]
    %v911 = vld [vmem:[%s17 + $0x50] sm:$0xff]
    %v912 = vld [vmem:[%s17 + $0x58] sm:$0xff]
    %v913 = vld [vmem:[%s17 + $0x60] sm:$0xff]
    %v914 = vld [vmem:[%s17 + $0x68] sm:$0xff]
    %v915 = vld [vmem:[%s17 + $0x70] sm:$0xff]
    %v916 = vld [vmem:[%s17 + $0x78] sm:$0xff]
    %v918 = vsel %vm786, 0.0, 0
    %920 = vmatpush.msra.mxu0 0.0
    %921 = vmatpush.msra.mxu0 0.0
    %922 = vmatpush.msra.mxu0 0.0
    %923 = vmatpush.msra.mxu0 0.0
    %924 = vmatpush.msra.mxu0 0.0
    %925 = vmatpush.msra.mxu0 0.0
    %926 = vmatpush.msra.mxu0 0.0
    %927 = vmatpush.msra.mxu0 0.0
    %928 = vmatpush.msra.mxu0 %v915
    %929 = vmatpush.msra.mxu0 %v913
    %930 = vmatpush.msra.mxu0 %v911
    %931 = vmatpush.msra.mxu0 %v909
    %932 = vmatpush.msra.mxu0 %v907
    %933 = vmatpush.msra.mxu0 %v905
    %934 = vmatpush.msra.mxu0 %v903
    %935 = vmatpush.msra.mxu0 %v901
    %936 = vmatmul.f32.gmra.mxu0 %v918
    %v937 = vpop.f32.mrf.mxu0
    %v938 = vadd.f32 0.0, %v937
    %939 = vdwg.mxu0
    %940 = vmatpush.msra.mxu0 0.0
    %941 = vmatpush.msra.mxu0 0.0
    %942 = vmatpush.msra.mxu0 0.0
    %943 = vmatpush.msra.mxu0 0.0
    %944 = vmatpush.msra.mxu0 0.0
    %945 = vmatpush.msra.mxu0 0.0
    %946 = vmatpush.msra.mxu0 0.0
    %947 = vmatpush.msra.mxu0 0.0
    %948 = vmatpush.msra.mxu0 %v916
    %949 = vmatpush.msra.mxu0 %v914
    %950 = vmatpush.msra.mxu0 %v912
    %951 = vmatpush.msra.mxu0 %v910
    %952 = vmatpush.msra.mxu0 %v908
    %953 = vmatpush.msra.mxu0 %v906
    %954 = vmatpush.msra.mxu0 %v904
    %955 = vmatpush.msra.mxu0 %v902
    %956 = vmatmul.f32.gmra.mxu0 %v918
    %v957 = vpop.f32.mrf.mxu0
    %v958 = vadd.f32 0.0, %v957
    %959 = vdwg.mxu0
    %v960 = vadd.f32 %v897, %v938
    %v961 = vadd.f32 %v898, %v958
    %v962 = vxor.u32 %v960, 2147483648
    %v963 = vmul.f32 %v962, 1.442695
    %v964 = vpow.pop %v963
    %v965 = vadd.f32 %v964, 1.0
    %v966 = vrcp.pop %v965
    %v967 = vmul.f32 %v965, %v966
    %v968 = vsub.f32 1.0, %v967
    %v969 = vmul.f32 %v966, %v968
    %v970 = vadd.f32 %v966, %v969
    %vm971 = vweird.f32 %v965
    %vm972 = vweird.f32 %v966
    %vm973 = vmor %vm971, %vm972
    %v974 = vsel %vm973, %v966, %v970
    %v975 = vand.u32 2147483647, %v965
    %vm976 = vcmp.eq.f32.partialorder %v975, 8.507059e+37
    %v977 = vand.u32 %v965, 2147483648
    %v978 = vor.u32 1.1754944e-38, %v977
    %v979 = vsel %vm976, %v978, %v974
    %v980 = vmul.f32 1.0, %v979
    %v981 = vtanh.pop %v961
    %v982 = vxor.u32 %v961, 2147483648
    %v983 = vmul.f32 %v982, 1.442695
    %v984 = vpow.pop %v983
    %v985 = vadd.f32 %v984, 1.0
    %v986 = vrcp.pop %v985
    %v987 = vmul.f32 %v985, %v986
    %v988 = vsub.f32 1.0, %v987
    %v989 = vmul.f32 %v986, %v988
    %v990 = vadd.f32 %v986, %v989
    %vm991 = vweird.f32 %v985
    %vm992 = vweird.f32 %v986
    %vm993 = vmor %vm991, %vm992
    %v994 = vsel %vm993, %v986, %v990
    %v995 = vand.u32 2147483647, %v985
    %vm996 = vcmp.eq.f32.partialorder %v995, 8.507059e+37
    %v997 = vand.u32 %v985, 2147483648
    %v998 = vor.u32 1.1754944e-38, %v997
    %v999 = vsel %vm996, %v998, %v994
    %v1000 = vmul.f32 1.0, %v999
    %v1001 = vmul.f32 %v980, 0.0
    %v1002 = vmul.f32 %v980, %v981
    %1004 = vrot.lane.b32.xlu0 %v1002, 64
    %v1005 = vpop.permute.xlu0 %1004
    %v1007 = vadd.f32 %v1001, %v1005
    %v1008 = vtanh.pop %v1007
    %v1009 = vmul.f32 %v1000, %v1008
    %1011 = vrot.lane.b32.xlu0 %v1009, 64
    %v1012 = vpop.permute.xlu0 %1011
    %1014 = vst.msk [vmem:[#allocation2] sm:$0xff] %vm786, %v1012
    %v1015 = vsel %vm786, %v1012, 0
    %1017 = vmatpush.msra.mxu0 0.0
    %1018 = vmatpush.msra.mxu0 0.0
    %1019 = vmatpush.msra.mxu0 0.0
    %1020 = vmatpush.msra.mxu0 0.0
    %1021 = vmatpush.msra.mxu0 0.0
    %1022 = vmatpush.msra.mxu0 0.0
    %1023 = vmatpush.msra.mxu0 0.0
    %1024 = vmatpush.msra.mxu0 0.0
    %1025 = vmatpush.msra.mxu0 %v915
    %1026 = vmatpush.msra.mxu0 %v913
    %1027 = vmatpush.msra.mxu0 %v911
    %1028 = vmatpush.msra.mxu0 %v909
    %1029 = vmatpush.msra.mxu0 %v907
    %1030 = vmatpush.msra.mxu0 %v905
    %1031 = vmatpush.msra.mxu0 %v903
    %1032 = vmatpush.msra.mxu0 %v901
    %1033 = vmatmul.f32.gmra.mxu0 %v1015
    %v1034 = vpop.f32.mrf.mxu0
    %v1035 = vadd.f32 0.0, %v1034
    %1036 = vdwg.mxu0
    %1037 = vmatpush.msra.mxu0 0.0
    %1038 = vmatpush.msra.mxu0 0.0
    %1039 = vmatpush.msra.mxu0 0.0
    %1040 = vmatpush.msra.mxu0 0.0
    %1041 = vmatpush.msra.mxu0 0.0
    %1042 = vmatpush.msra.mxu0 0.0
    %1043 = vmatpush.msra.mxu0 0.0
    %1044 = vmatpush.msra.mxu0 0.0
    %1045 = vmatpush.msra.mxu0 %v916
    %1046 = vmatpush.msra.mxu0 %v914
    %1047 = vmatpush.msra.mxu0 %v912
    %1048 = vmatpush.msra.mxu0 %v910
    %1049 = vmatpush.msra.mxu0 %v908
    %1050 = vmatpush.msra.mxu0 %v906
    %1051 = vmatpush.msra.mxu0 %v904
    %1052 = vmatpush.msra.mxu0 %v902
    %1053 = vmatmul.f32.gmra.mxu0 %v1015
    %v1054 = vpop.f32.mrf.mxu0
    %v1055 = vadd.f32 0.0, %v1054
    %1056 = vdwg.mxu0
    %v1057 = vadd.f32 %v899, %v1035
    %v1058 = vadd.f32 %v900, %v1055
    %v1059 = vxor.u32 %v1057, 2147483648
    %v1060 = vmul.f32 %v1059, 1.442695
    %v1061 = vpow.pop %v1060
    %v1062 = vadd.f32 %v1061, 1.0
    %v1063 = vrcp.pop %v1062
    %v1064 = vmul.f32 %v1062, %v1063
    %v1065 = vsub.f32 1.0, %v1064
    %v1066 = vmul.f32 %v1063, %v1065
    %v1067 = vadd.f32 %v1063, %v1066
    %vm1068 = vweird.f32 %v1062
    %vm1069 = vweird.f32 %v1063
    %vm1070 = vmor %vm1068, %vm1069
    %v1071 = vsel %vm1070, %v1063, %v1067
    %v1072 = vand.u32 2147483647, %v1062
    %vm1073 = vcmp.eq.f32.partialorder %v1072, 8.507059e+37
    %v1074 = vand.u32 %v1062, 2147483648
    %v1075 = vor.u32 1.1754944e-38, %v1074
    %v1076 = vsel %vm1073, %v1075, %v1071
    %v1077 = vmul.f32 1.0, %v1076
    %v1078 = vtanh.pop %v1058
    %v1079 = vxor.u32 %v1058, 2147483648
    %v1080 = vmul.f32 %v1079, 1.442695
    %v1081 = vpow.pop %v1080
    %v1082 = vadd.f32 %v1081, 1.0
    %v1083 = vrcp.pop %v1082
    %v1084 = vmul.f32 %v1082, %v1083
    %v1085 = vsub.f32 1.0, %v1084
    %v1086 = vmul.f32 %v1083, %v1085
    %v1087 = vadd.f32 %v1083, %v1086
    %vm1088 = vweird.f32 %v1082
    %vm1089 = vweird.f32 %v1083
    %vm1090 = vmor %vm1088, %vm1089
    %v1091 = vsel %vm1090, %v1083, %v1087
    %v1092 = vand.u32 2147483647, %v1082
    %vm1093 = vcmp.eq.f32.partialorder %v1092, 8.507059e+37
    %v1094 = vand.u32 %v1082, 2147483648
    %v1095 = vor.u32 1.1754944e-38, %v1094
    %v1096 = vsel %vm1093, %v1095, %v1091
    %v1097 = vmul.f32 1.0, %v1096
    %v1098 = vmul.f32 %v1077, %v1007
    %v1099 = vmul.f32 %v1077, %v1078
    %1101 = vrot.lane.b32.xlu0 %v1099, 64
    %v1102 = vpop.permute.xlu0 %1101
    %v1104 = vadd.f32 %v1098, %v1102
    %v1105 = vtanh.pop %v1104
    %v1106 = vmul.f32 %v1097, %v1105
    %1108 = vrot.lane.b32.xlu0 %v1106, 64
    %v1109 = vpop.permute.xlu0 %1108
    %1111 = vst.msk [vmem:[#allocation2 + $0x8] sm:$0xff] %vm786, %v1109
    %v1112 = vld [vmem:[#allocation2] sm:$0xff]
    %v1113 = vld [vmem:[#allocation2 + $0x8] sm:$0xff]
    %v1114 = vld [vmem:[%s18] sm:$0xff]
    %v1115 = vld [vmem:[%s18 + $0x8] sm:$0xff]
    %v1116 = vld [vmem:[%s18 + $0x10] sm:$0xff]
    %v1117 = vld [vmem:[%s18 + $0x18] sm:$0xff]
    %v1118 = vld [vmem:[%s18 + $0x20] sm:$0xff]
    %v1119 = vld [vmem:[%s18 + $0x28] sm:$0xff]
    %v1120 = vld [vmem:[%s18 + $0x30] sm:$0xff]
    %v1121 = vld [vmem:[%s18 + $0x38] sm:$0xff]
    %v1122 = vld [vmem:[%s18 + $0x40] sm:$0xff]
    %v1123 = vld [vmem:[%s18 + $0x48] sm:$0xff]
    %v1124 = vld [vmem:[%s18 + $0x50] sm:$0xff]
    %v1125 = vld [vmem:[%s18 + $0x58] sm:$0xff]
    %v1126 = vld [vmem:[%s18 + $0x60] sm:$0xff]
    %v1127 = vld [vmem:[%s18 + $0x68] sm:$0xff]
    %v1128 = vld [vmem:[%s18 + $0x70] sm:$0xff]
    %v1129 = vld [vmem:[%s18 + $0x78] sm:$0xff]
    %v1131 = vsel %vm786, %v1112, 0
    %v1134 = vsel %vm786, %v1113, 0
    %1136 = vmatpush.msra.mxu0 0.0
    %1137 = vmatpush.msra.mxu0 0.0
    %1138 = vmatpush.msra.mxu0 0.0
    %1139 = vmatpush.msra.mxu0 0.0
    %1140 = vmatpush.msra.mxu0 0.0
    %1141 = vmatpush.msra.mxu0 0.0
    %1142 = vmatpush.msra.mxu0 0.0
    %1143 = vmatpush.msra.mxu0 0.0
    %1144 = vmatpush.msra.mxu0 %v1128
    %1145 = vmatpush.msra.mxu0 %v1126
    %1146 = vmatpush.msra.mxu0 %v1124
    %1147 = vmatpush.msra.mxu0 %v1122
    %1148 = vmatpush.msra.mxu0 %v1120
    %1149 = vmatpush.msra.mxu0 %v1118
    %1150 = vmatpush.msra.mxu0 %v1116
    %1151 = vmatpush.msra.mxu0 %v1114
    %1152 = vmatmul.f32.gmra.mxu0 %v1131
    %v1153 = vpop.f32.mrf.mxu0
    %v1154 = vadd.f32 0.0, %v1153
    %1155 = vmatmul.f32.gmra.mxu0 %v1134
    %v1156 = vpop.f32.mrf.mxu0
    %v1157 = vadd.f32 0.0, %v1156
    %1158 = vdwg.mxu0
    %1159 = vmatpush.msra.mxu0 0.0
    %1160 = vmatpush.msra.mxu0 0.0
    %1161 = vmatpush.msra.mxu0 0.0
    %1162 = vmatpush.msra.mxu0 0.0
    %1163 = vmatpush.msra.mxu0 0.0
    %1164 = vmatpush.msra.mxu0 0.0
    %1165 = vmatpush.msra.mxu0 0.0
    %1166 = vmatpush.msra.mxu0 0.0
    %1167 = vmatpush.msra.mxu0 %v1129
    %1168 = vmatpush.msra.mxu0 %v1127
    %1169 = vmatpush.msra.mxu0 %v1125
    %1170 = vmatpush.msra.mxu0 %v1123
    %1171 = vmatpush.msra.mxu0 %v1121
    %1172 = vmatpush.msra.mxu0 %v1119
    %1173 = vmatpush.msra.mxu0 %v1117
    %1174 = vmatpush.msra.mxu0 %v1115
    %1175 = vmatmul.f32.gmra.mxu0 %v1131
    %v1176 = vpop.f32.mrf.mxu0
    %v1177 = vadd.f32 0.0, %v1176
    %1178 = vmatmul.f32.gmra.mxu0 %v1134
    %v1179 = vpop.f32.mrf.mxu0
    %v1180 = vadd.f32 0.0, %v1179
    %1181 = vdwg.mxu0
    %v1182 = vld [vmem:[%s19] sm:$0xff]
    %v1183 = vld [vmem:[%s19 + $0x8] sm:$0xff]
    %v1184 = vld [vmem:[%s19 + $0x10] sm:$0xff]
    %v1185 = vld [vmem:[%s19 + $0x18] sm:$0xff]
    %v1186 = vmul.f32 %v1154, %v1182
    %v1187 = vmul.f32 %v1177, %v1183
    %v1188 = vmul.f32 %v1157, %v1184
    %v1189 = vmul.f32 %v1180, %v1185
    %v1190 = vld [vmem:[%s20] sm:$0x3]
    %v1192 = vsel %vm96, %v1190, 0
    %1194 = vmatpush.msra.mxu0 0.0
    %1195 = vmatpush.msra.mxu0 0.0
    %1196 = vmatpush.msra.mxu0 0.0
    %1197 = vmatpush.msra.mxu0 0.0
    %1198 = vmatpush.msra.mxu0 0.0
    %1199 = vmatpush.msra.mxu0 0.0
    %1200 = vmatpush.msra.mxu0 0.0
    %1201 = vmatpush.msra.mxu0 0.0
    %1202 = vmatpush.msra.mxu0 0.0
    %1203 = vmatpush.msra.mxu0 0.0
    %1204 = vmatpush.msra.mxu0 0.0
    %1205 = vmatpush.msra.mxu0 0.0
    %1206 = vmatpush.msra.mxu0 0.0
    %1207 = vmatpush.msra.mxu0 0.0
    %1208 = vmatpush.msra.mxu0 %v1188
    %1209 = vmatpush.msra.mxu0 %v1186
    %1210 = vmatmul.f32.gmra.mxu0 %v1192
    %v1211 = vpop.f32.mrf.mxu0
    %v1212 = vadd.f32 0.0, %v1211
    %1213 = vdwg.mxu0
    %1214 = vmatpush.msra.mxu0 0.0
    %1215 = vmatpush.msra.mxu0 0.0
    %1216 = vmatpush.msra.mxu0 0.0
    %1217 = vmatpush.msra.mxu0 0.0
    %1218 = vmatpush.msra.mxu0 0.0
    %1219 = vmatpush.msra.mxu0 0.0
    %1220 = vmatpush.msra.mxu0 0.0
    %1221 = vmatpush.msra.mxu0 0.0
    %1222 = vmatpush.msra.mxu0 0.0
    %1223 = vmatpush.msra.mxu0 0.0
    %1224 = vmatpush.msra.mxu0 0.0
    %1225 = vmatpush.msra.mxu0 0.0
    %1226 = vmatpush.msra.mxu0 0.0
    %1227 = vmatpush.msra.mxu0 0.0
    %1228 = vmatpush.msra.mxu0 %v1189
    %1229 = vmatpush.msra.mxu0 %v1187
    %1230 = vmatmul.f32.gmra.mxu0 %v1192
    %v1231 = vpop.f32.mrf.mxu0
    %v1232 = vadd.f32 0.0, %v1231
    %1233 = vdwg.mxu0
    %v1234 = vld [vmem:[%s21] sm:$0xff]
    %v1235 = vld [vmem:[%s21 + $0x8] sm:$0xff]
    %v1236 = vld [vmem:[%s21 + $0x10] sm:$0xff]
    %v1237 = vld [vmem:[%s21 + $0x18] sm:$0xff]
    %v1238 = vld [vmem:[%s21 + $0x20] sm:$0xff]
    %v1239 = vld [vmem:[%s21 + $0x28] sm:$0xff]
    %v1240 = vld [vmem:[%s21 + $0x30] sm:$0xff]
    %v1241 = vld [vmem:[%s21 + $0x38] sm:$0xff]
    %v1242 = vld [vmem:[%s21 + $0x40] sm:$0xff]
    %v1243 = vld [vmem:[%s21 + $0x48] sm:$0xff]
    %v1244 = vld [vmem:[%s21 + $0x50] sm:$0xff]
    %v1245 = vld [vmem:[%s21 + $0x58] sm:$0xff]
    %v1246 = vld [vmem:[%s21 + $0x60] sm:$0xff]
    %v1247 = vld [vmem:[%s21 + $0x68] sm:$0xff]
    %v1248 = vld [vmem:[%s21 + $0x70] sm:$0xff]
    %v1249 = vld [vmem:[%s21 + $0x78] sm:$0xff]
    %v1250 = vld [vmem:[%s21 + $0x80] sm:$0xff]
    %v1251 = vld [vmem:[%s21 + $0x88] sm:$0xff]
    %v1252 = vld [vmem:[%s21 + $0x90] sm:$0xff]
    %v1253 = vld [vmem:[%s21 + $0x98] sm:$0xff]
    %v1254 = vld [vmem:[%s21 + $0xa0] sm:$0xff]
    %v1255 = vld [vmem:[%s21 + $0xa8] sm:$0xff]
    %v1256 = vld [vmem:[%s21 + $0xb0] sm:$0xff]
    %v1257 = vld [vmem:[%s21 + $0xb8] sm:$0xff]
    %v1258 = vld [vmem:[%s21 + $0xc0] sm:$0xff]
    %v1259 = vld [vmem:[%s21 + $0xc8] sm:$0xff]
    %v1260 = vld [vmem:[%s21 + $0xd0] sm:$0xff]
    %v1261 = vld [vmem:[%s21 + $0xd8] sm:$0xff]
    %v1262 = vld [vmem:[%s21 + $0xe0] sm:$0xff]
    %v1263 = vld [vmem:[%s21 + $0xe8] sm:$0xff]
    %v1264 = vld [vmem:[%s21 + $0xf0] sm:$0xff]
    %v1265 = vld [vmem:[%s21 + $0xf8] sm:$0xff]
    %v1266 = vld [vmem:[%s22] sm:$0x1]
    %v1268 = vperm.slane %v1266, 0
    %1270 = vmatpush.msra.mxu0 %v1249
    %1271 = vmatpush.msra.mxu0 %v1248
    %1272 = vmatpush.msra.mxu0 %v1247
    %1273 = vmatpush.msra.mxu0 %v1246
    %1274 = vmatpush.msra.mxu0 %v1245
    %1275 = vmatpush.msra.mxu0 %v1244
    %1276 = vmatpush.msra.mxu0 %v1243
    %1277 = vmatpush.msra.mxu0 %v1242
    %1278 = vmatpush.msra.mxu0 %v1241
    %1279 = vmatpush.msra.mxu0 %v1240
    %1280 = vmatpush.msra.mxu0 %v1239
    %1281 = vmatpush.msra.mxu0 %v1238
    %1282 = vmatpush.msra.mxu0 %v1237
    %1283 = vmatpush.msra.mxu0 %v1236
    %1284 = vmatpush.msra.mxu0 %v1235
    %1285 = vmatpush.msra.mxu0 %v1234
    %1286 = vmatmul.f32.gmra.mxu0 %v1212
    %v1287 = vpop.f32.mrf.mxu0
    %v1288 = vadd.f32 %v1268, %v1287
    %1289 = vdwg.mxu0
    %1290 = vmatpush.msra.mxu0 %v1265
    %1291 = vmatpush.msra.mxu0 %v1264
    %1292 = vmatpush.msra.mxu0 %v1263
    %1293 = vmatpush.msra.mxu0 %v1262
    %1294 = vmatpush.msra.mxu0 %v1261
    %1295 = vmatpush.msra.mxu0 %v1260
    %1296 = vmatpush.msra.mxu0 %v1259
    %1297 = vmatpush.msra.mxu0 %v1258
    %1298 = vmatpush.msra.mxu0 %v1257
    %1299 = vmatpush.msra.mxu0 %v1256
    %1300 = vmatpush.msra.mxu0 %v1255
    %1301 = vmatpush.msra.mxu0 %v1254
    %1302 = vmatpush.msra.mxu0 %v1253
    %1303 = vmatpush.msra.mxu0 %v1252
    %1304 = vmatpush.msra.mxu0 %v1251
    %1305 = vmatpush.msra.mxu0 %v1250
    %1306 = vmatmul.f32.gmra.mxu0 %v1232
    %v1307 = vpop.f32.mrf.mxu0
    %v1308 = vadd.f32 %v1288, %v1307
    %1309 = vdwg.mxu0
    %v1310 = vld [vmem:[%s0] sm:$0x3]
    %v1311 = vld [vmem:[%s23] sm:$0xff]
    %v1312 = vld [vmem:[%s23 + $0x8] sm:$0xff]
    %v1313 = vld [vmem:[%s23 + $0x10] sm:$0xff]
    %v1314 = vld [vmem:[%s23 + $0x18] sm:$0xff]
    %v1315 = vld [vmem:[%s24] sm:$0xff]
    %v1316 = vld [vmem:[%s24 + $0x8] sm:$0xff]
    %v1317 = vld [vmem:[%s24 + $0x10] sm:$0xff]
    %v1318 = vld [vmem:[%s24 + $0x18] sm:$0xff]
    %vm1319 = vcmask 261120
    %v1321 = vsel %vm1319, %v1308, 0
    %1323 = vmatpush.msra.mxu0 0.0
    %1324 = vmatpush.msra.mxu0 0.0
    %1325 = vmatpush.msra.mxu0 0.0
    %1326 = vmatpush.msra.mxu0 0.0
    %1327 = vmatpush.msra.mxu0 0.0
    %1328 = vmatpush.msra.mxu0 0.0
    %1329 = vmatpush.msra.mxu0 0.0
    %1330 = vmatpush.msra.mxu0 0.0
    %1331 = vmatpush.msra.mxu0 0.0
    %1332 = vmatpush.msra.mxu0 0.0
    %1333 = vmatpush.msra.mxu0 0.0
    %1334 = vmatpush.msra.mxu0 0.0
    %1335 = vmatpush.msra.mxu0 %v1318
    %1336 = vmatpush.msra.mxu0 %v1317
    %1337 = vmatpush.msra.mxu0 %v1316
    %1338 = vmatpush.msra.mxu0 %v1315
    %1339 = vmatmul.f32.gmra.mxu0 %v1321
    %v1340 = vpop.f32.mrf.mxu0
    %v1341 = vadd.f32 0.0, %v1340
    %1342 = vdwg.mxu0
    %v1344 = vsel %vm1319, %v1310, 0
    %1346 = vmatpush.msra.mxu0 0.0
    %1347 = vmatpush.msra.mxu0 0.0
    %1348 = vmatpush.msra.mxu0 0.0
    %1349 = vmatpush.msra.mxu0 0.0
    %1350 = vmatpush.msra.mxu0 0.0
    %1351 = vmatpush.msra.mxu0 0.0
    %1352 = vmatpush.msra.mxu0 0.0
    %1353 = vmatpush.msra.mxu0 0.0
    %1354 = vmatpush.msra.mxu0 0.0
    %1355 = vmatpush.msra.mxu0 0.0
    %1356 = vmatpush.msra.mxu0 0.0
    %1357 = vmatpush.msra.mxu0 0.0
    %1358 = vmatpush.msra.mxu0 %v1314
    %1359 = vmatpush.msra.mxu0 %v1313
    %1360 = vmatpush.msra.mxu0 %v1312
    %1361 = vmatpush.msra.mxu0 %v1311
    %1362 = vmatmul.f32.gmra.mxu0 %v1344
    %v1363 = vpop.f32.mrf.mxu0
    %v1364 = vadd.f32 %v1341, %v1363
    %1365 = vdwg.mxu0
    %v1366 = vld [vmem:[%s25] sm:$0x1]
    %v1368 = vperm.slane %v1366, 0
    %v1370 = vadd.f32 %v1364, %v1368
    %v1371 = vld [vmem:[%s26] sm:$0xff]
    %v1372 = vld [vmem:[%s26 + $0x8] sm:$0xff]
    %v1373 = vld [vmem:[%s26 + $0x10] sm:$0xff]
    %v1374 = vld [vmem:[%s26 + $0x18] sm:$0xff]
    %v1375 = vld [vmem:[%s27] sm:$0x1]
    %v1377 = vperm.slane %v1375, 0
    %v1380 = vsel %vm1319, %v1370, 0
    %1382 = vmatpush.msra.mxu0 0.0
    %1383 = vmatpush.msra.mxu0 0.0
    %1384 = vmatpush.msra.mxu0 0.0
    %1385 = vmatpush.msra.mxu0 0.0
    %1386 = vmatpush.msra.mxu0 0.0
    %1387 = vmatpush.msra.mxu0 0.0
    %1388 = vmatpush.msra.mxu0 0.0
    %1389 = vmatpush.msra.mxu0 0.0
    %1390 = vmatpush.msra.mxu0 0.0
    %1391 = vmatpush.msra.mxu0 0.0
    %1392 = vmatpush.msra.mxu0 0.0
    %1393 = vmatpush.msra.mxu0 0.0
    %1394 = vmatpush.msra.mxu0 %v1374
    %1395 = vmatpush.msra.mxu0 %v1373
    %1396 = vmatpush.msra.mxu0 %v1372
    %1397 = vmatpush.msra.mxu0 %v1371
    %1398 = vmatmul.f32.gmra.mxu0 %v1380
    %v1399 = vpop.f32.mrf.mxu0
    %v1400 = vadd.f32 %v1377, %v1399
    %1401 = vdwg.mxu0
    %vm1402 = vcmask 9216
    %v1403 = vsel %vm1402, %v1400, -inf
    %1404 = vmax.xlane.f32.xlu0 %v1403
    %v1405 = vpop.xlane.xlu0 %1404
    %v1406 = vsub.f32 %v1400, %v1405
    %v1407 = vmul.f32 %v1406, 1.442695
    %v1408 = vpow.pop %v1407
    %v1409 = vsel %vm1402, %v1408, 0.0
    %1410 = vadd.xlane.f32.xlu0 %v1409
    %v1411 = vpop.xlane.xlu0 %1410
    %v1412 = vrcp.pop %v1411
    %v1413 = vmul.f32 %v1411, %v1412
    %v1414 = vsub.f32 1.0, %v1413
    %v1415 = vmul.f32 %v1412, %v1414
    %v1416 = vadd.f32 %v1412, %v1415
    %vm1417 = vweird.f32 %v1411
    %vm1418 = vweird.f32 %v1412
    %vm1419 = vmor %vm1417, %vm1418
    %v1420 = vsel %vm1419, %v1412, %v1416
    %v1421 = vand.u32 2147483647, %v1411
    %vm1422 = vcmp.eq.f32.partialorder %v1421, 8.507059e+37
    %v1423 = vand.u32 %v1411, 2147483648
    %v1424 = vor.u32 1.1754944e-38, %v1423
    %v1425 = vsel %vm1422, %v1424, %v1420
    %v1426 = vmul.f32 %v1408, %v1425
    %1427 = vst.msk [vmem:[#allocation3] sm:$0x3] %vm1402, %v1426
    // Predicated region
    $region114: #{lstm6_forward.3} parent=1 // pred_check
      _
    $region115: #{lstm6_forward.3} parent=1 // pred_check_branch
      %1429 = sbr.rel (0) target = $region117
    $region116: #{lstm6_forward.3} parent=1 // pred_region
      %1431 = vsyncadd [#allocation4], 0
      %s1433 = sshll.u32 [#allocation3], 4
      %s1434 = int_to_ptr.vmem [resolvable:$true] %s1433
      %s1435 = sshll.u32 %s28, 4
      %s1436 = int_to_ptr.hbm [resolvable:$true] %s1435
      %1438 = dma.vmem_to_hbm [thread:$0]  %s1434, 32, %s1436, [#allocation4]
    $region117: #{lstm6_forward.3} parent=1 // pred_fallthru
      _
    // Predicated region
    $region118: #{lstm6_forward.3} parent=1 // pred_check
      _
    $region119: #{lstm6_forward.3} parent=1 // pred_check_branch
      %1440 = sbr.rel (0) target = $region121
    $region120: #{lstm6_forward.3} parent=1 // pred_region
      %1442 = dma.done [#allocation4], 32
    $region121: #{lstm6_forward.3} parent=1 // pred_fallthru
      _
    %1443 = vsyncpa [#allocation4], 1

</llo_original>
